<compile_context>
chip_gen: v7x
topology: tpu7x:2x2x1
jax: 0.10.0
libtpu: 0.0.40
codegen_flags: <defaults>
</compile_context>

<pallas_src>
import functools

import numpy as np
import jax
import jax.numpy as jnp
from jax.experimental import pallas as pl
from jax.experimental.pallas import tpu as pltpu

L = 512   # size[1] for size_arg='small'
D = 256   # size[2] for size_arg='small'


# --------------------------------------------------------------------------- #
# Pallas kernel: all dense math of the tier-1 forward, single invocation.
# --------------------------------------------------------------------------- #
def _tier1_kernel(x_ref, w0_ref, wvu_ref, ww_ref, wcls_ref, b_ref,
                  tmid_ref, scores_ref, preds_ref, cam_ref,
                  *, n_classes, num_group, group_size):
    C, G, NI = n_classes, num_group, group_size

    # ---- DimReduction: tmid = relu(x @ W0^T)   (fc1 has no bias) ------------
    x = x_ref[...]                                                   # [N, F]
    tmid = jnp.maximum(
        jnp.dot(x, w0_ref[...], preferred_element_type=jnp.float32), 0.0)  # [N, L]
    tmid_ref[...] = tmid

    # ---- Attention_Gated: V and U fused into one [L, 2D] matmul -------------
    h = jnp.dot(tmid, wvu_ref[...], preferred_element_type=jnp.float32)    # [N, 2D]
    av = jnp.tanh(h[:, :D] + b_ref[0:1, :])                          # [N, D]
    au = jax.nn.sigmoid(h[:, D:] + b_ref[1:2, :])                    # [N, D]
    gated = av * au                                                  # [N, D]

    bw_row = b_ref[2:3, :C]                                          # [1, C]
    bcls_row = b_ref[3:4, :C]                                        # [1, C]

    # ---- per-class attention logits + per-instance classifier logits --------
    # ww / wcls stay lane-dense ([C, D] / [C, L]); one XLU lane reduction per
    # class replaces a degenerate lane-width-C MXU matmul (XLU slot is free
    # relative to the VPU/MXU work here).
    s_cols, m_cols = [], []
    for c in range(C):
        ww_c = ww_ref[c:c + 1, :]                                    # [1, D]
        wc_c = wcls_ref[c:c + 1, :]                                  # [1, L]
        s_cols.append(jnp.sum(gated * ww_c, axis=-1, keepdims=True))  # [N, 1]
        m_cols.append(jnp.sum(tmid * wc_c, axis=-1, keepdims=True))   # [N, 1]
    scores = jnp.concatenate(s_cols, axis=-1) + bw_row               # [N, C]
    m_all = jnp.concatenate(m_cols, axis=-1)                         # [N, C]
    scores_ref[...] = scores       # unnormalized attention (isNorm=False) -> AA

    # ---- per pseudo-bag-group finalization (groups = contiguous row blocks) -
    row = jax.lax.broadcasted_iota(jnp.int32, (NI, C), 0)
    col = jax.lax.broadcasted_iota(jnp.int32, (NI, C), 1)
    diag = row == col

    cam_blocks, pred_rows = [], []
    for g in range(G):
        lo = g * NI
        s_g = scores[lo:lo + NI, :]                                  # [NI, C]
        m_g = m_all[lo:lo + NI, :]                                   # [NI, C]

        # softmax over the instance axis per class  (== F.softmax(A.T, dim=1))
        s_max = jnp.max(s_g, axis=0, keepdims=True)
        e = jnp.exp(s_g - s_max)
        a_g = e / jnp.sum(e, axis=0, keepdims=True)                  # [NI, C]

        # get_cam_1d logits:  cam[n, c] = A[n, c] * (tmid[n] . Wcls[c])
        cam_blocks.append(a_g * m_g)

        # tPredict[0, c] = classifier[c](tattFeats[c]), where tattFeats is the
        # LAST class's attention-weighted features (faithful to the reference
        # code):  pred[c] = A[c, C-1] * (tmid[c] . Wcls[c]) + bcls[c]
        contrib = jnp.where(diag, a_g[:, C - 1:C] * m_g, 0.0)        # [NI, C]
        pred_rows.append(jnp.sum(contrib, axis=0, keepdims=True) + bcls_row)

    # Single store per output ref (no per-group partial writebacks).
    cam_ref[...] = jnp.concatenate(cam_blocks, axis=0)               # [N, C]
    preds_ref[...] = jnp.concatenate(pred_rows, axis=0)              # [G, C]


def _tier1_core(x_grouped, packed, *, n_classes, num_group):
    n, _ = x_grouped.shape
    ni = n // num_group
    w0t, wvu, ww, wcls, b_pack = packed
    kernel = functools.partial(_tier1_kernel, n_classes=n_classes,
                               num_group=num_group, group_size=ni)
    out_shape = (
        jax.ShapeDtypeStruct((n, L), jnp.float32),                  # tmid
        jax.ShapeDtypeStruct((n, n_classes), jnp.float32),          # attn scores
        jax.ShapeDtypeStruct((num_group, n_classes), jnp.float32),  # slide_sub_preds
        jax.ShapeDtypeStruct((n, n_classes), jnp.float32),          # CAM logits
    )
    return pl.pallas_call(
        kernel,
        out_shape=out_shape,
        compiler_params=pltpu.CompilerParams(vmem_limit_bytes=32 * 1024 * 1024),
    )(x_grouped, w0t, wvu, ww, wcls, b_pack)


# --------------------------------------------------------------------------- #
# Full forward wrapper (mirrors DTFD_MIL_tier1.forward with dropout=False,
# numLayer_Res=0, distill='MaxMinS', return_attn=True).
# --------------------------------------------------------------------------- #
def dtfd_mil_tier1_forward(tfeat_tensor, tslideLabel, packed, perm, *,
                           n_classes, num_group, total_instance,
                           distill='MaxMinS'):
    n_inst, _ = tfeat_tensor.shape
    assert n_inst % num_group == 0, "demo uses equal-size pseudo-bag groups"
    ni = n_inst // num_group
    assert ni >= n_classes        # reference code indexes tattFeats[c]
    k_inst = total_instance // num_group
    # TODO(synk): only the default distill='MaxMinS' path is wired up ('MaxS'/'AFS' not needed here).
    assert distill == 'MaxMinS'

    # random.shuffle + np.array_split with N % numGroup == 0 -> contiguous
    # equal-size groups of the permuted instances.
    x_grouped = tfeat_tensor[perm]                                   # [N, F]

    tmid, scores, slide_sub_preds, cam = _tier1_core(
        x_grouped, packed, n_classes=n_classes, num_group=num_group)

    # ---- distillation (MaxMinS): data-dependent top/bottom-k gather ---------
    # TODO(synk): torch.sort / index_select selection stays on the XLA side; the
    # softmax over the classifier's size-1 output dim is identically 1, so the
    # sort is a pure tie-break (stable / index order, like torch's small sort).
    slide_pseudo_feat = []
    for c in range(n_classes):
        feats_c = []
        for g in range(num_group):
            logits = cam[g * ni:(g + 1) * ni, c][:, None]            # [NI, 1]
            sm = jax.nn.softmax(logits, axis=1)                      # all ones
            sort_idx = jnp.argsort(-sm[:, -1], stable=True)
            topk = jnp.concatenate([sort_idx[:k_inst], sort_idx[-k_inst:]])
            feats_c.append(tmid[g * ni + topk])                      # [2k, L]
        slide_pseudo_feat.append(jnp.concatenate(feats_c, axis=0))

    slide_sub_labels = jnp.concatenate([tslideLabel] * num_group, axis=0)

    # ---- AA = attention(dimReduction(tfeat), isNorm=False) ------------------
    # The per-instance scores are already computed (permuted order): un-permute
    # the rows instead of re-running the matmuls.
    inv = jnp.argsort(perm)
    AA = scores[inv].T                                               # [C, N]

    return slide_pseudo_feat, slide_sub_preds, slide_sub_labels, AA


# --------------------------------------------------------------------------- #
# Parameters (PyTorch-Linear-style init) and kernel-friendly packing.
# --------------------------------------------------------------------------- #
def init_params(key, fea_dim, n_classes):
    ks = jax.random.split(key, 9)

    def unif(k, shape, fan_in):
        b = 1.0 / float(fan_in) ** 0.5
        return jax.random.uniform(k, shape, jnp.float32, -b, b)

    w0 = unif(ks[0], (L, fea_dim), fea_dim)            # DimReduction.fc1 (no bias)
    wv = unif(ks[1], (D, L), L); bv = unif(ks[2], (D,), L)
    wu = unif(ks[3], (D, L), L); bu = unif(ks[4], (D,), L)
    ww = unif(ks[5], (n_classes, D), D); bw = unif(ks[6], (n_classes,), D)
    wcls = unif(ks[7], (n_classes, L), L); bcls = unif(ks[8], (n_classes,), L)
    return (w0, wv, bv, wu, bu, ww, bw, wcls, bcls)


def pack_params(params, n_classes):
    w0, wv, bv, wu, bu, ww, bw, wcls, bcls = params
    assert n_classes <= D
    w0t = w0.T                                         # [F, L]
    wvu = jnp.concatenate([wv.T, wu.T], axis=1)        # [L, 2D] fused V/U weights
    b_pack = jnp.zeros((4, D), jnp.float32)            # all biases, one stream
    b_pack = b_pack.at[0].set(bv).at[1].set(bu)
    b_pack = b_pack.at[2, :n_classes].set(bw).at[3, :n_classes].set(bcls)
    return (w0t, wvu, ww, wcls, b_pack)


# --------------------------------------------------------------------------- #
# Pure-JAX reference: line-by-line mirror of the PyTorch forward.
# --------------------------------------------------------------------------- #
def reference_forward(tfeat_tensor, tslideLabel, params, perm, *,
                      n_classes, num_group, total_instance):
    w0, wv, bv, wu, bu, ww, bw, wcls, bcls = params
    k_inst = total_instance // num_group
    index_chunk_list = [c.tolist() for c in
                        np.array_split(np.asarray(perm), num_group)]

    slide_pseudo_feat = [[] for _ in range(n_classes)]
    slide_sub_preds, slide_sub_labels = [], []
    for tindex in index_chunk_list:
        slide_sub_labels.append(tslideLabel)
        sub = tfeat_tensor[jnp.asarray(tindex)]
        tmid = jax.nn.relu(sub @ w0.T)                               # DimReduction
        av = jnp.tanh(tmid @ wv.T + bv)
        au = jax.nn.sigmoid(tmid @ wu.T + bu)
        A = (av * au) @ ww.T + bw                                    # [n, C]
        A = jax.nn.softmax(A.T, axis=1)                              # [C, n]
        tattFeat_all = []
        for c in range(n_classes):
            tattFeats = tmid * A[c][:, None]
            tattFeat_all.append(tattFeats)
        # Mirrors the reference code: classifier[c] is applied to row c of the
        # LAST class's `tattFeats`.
        tPredict = jnp.stack(
            [tattFeats[c] @ wcls[c] + bcls[c] for c in range(n_classes)])[None, :]
        slide_sub_preds.append(tPredict)
        for c in range(n_classes):
            cam = tattFeat_all[c] @ wcls[c]                          # get_cam_1d
            patch_pred_softmax = jax.nn.softmax(cam[:, None], axis=1)
            sort_idx = jnp.argsort(-patch_pred_softmax[:, -1], stable=True)
            topk = jnp.concatenate([sort_idx[:k_inst], sort_idx[-k_inst:]])
            slide_pseudo_feat[c].append(tmid[topk])                  # MaxMinS

    slide_pseudo_feat = [jnp.concatenate(f, axis=0) for f in slide_pseudo_feat]
    slide_sub_preds = jnp.concatenate(slide_sub_preds, axis=0)
    slide_sub_labels = jnp.concatenate(slide_sub_labels, axis=0)

    midFeat = jax.nn.relu(tfeat_tensor @ w0.T)
    av = jnp.tanh(midFeat @ wv.T + bv)
    au = jax.nn.sigmoid(midFeat @ wu.T + bu)
    AA = ((av * au) @ ww.T + bw).T                                   # isNorm=False
    return slide_pseudo_feat, slide_sub_preds, slide_sub_labels, AA


if __name__ == "__main__":
    fea_dim = 256
    n_classes = 2
    num_group = 3            # default numGroup
    total_instance = 3       # default -> 1 instance per group for Max/Min
    n_inst = 24              # instances in the bag (divisible by numGroup)

    key = jax.random.PRNGKey(0)
    k_x, k_p, k_perm = jax.random.split(key, 3)
    tfeat_tensor = jax.random.normal(k_x, (n_inst, fea_dim), dtype=jnp.float32)
    tslideLabel = jnp.array([1], dtype=jnp.int32)
    params = init_params(k_p, fea_dim, n_classes)
    packed = pack_params(params, n_classes)
    perm = jax.random.permutation(k_perm, n_inst)   # stands in for random.shuffle

    out = dtfd_mil_tier1_forward(
        tfeat_tensor, tslideLabel, packed, perm,
        n_classes=n_classes, num_group=num_group, total_instance=total_instance)
    pseudo, preds, labels, AA = jax.block_until_ready(out)

    ref_pseudo, ref_preds, ref_labels, ref_AA = reference_forward(
        tfeat_tensor, tslideLabel, params, perm,
        n_classes=n_classes, num_group=num_group, total_instance=total_instance)

    assert preds.shape == (num_group, n_classes)
    assert AA.shape == (n_classes, n_inst)
    assert jnp.array_equal(labels, ref_labels)
    assert jnp.allclose(preds, ref_preds, atol=1e-4, rtol=1e-3), (preds, ref_preds)
    assert jnp.allclose(AA, ref_AA, atol=1e-4, rtol=1e-3)
    for c in range(n_classes):
        assert pseudo[c].shape == ref_pseudo[c].shape == (num_group * 2, L)
        assert jnp.allclose(pseudo[c], ref_pseudo[c], atol=1e-4, rtol=1e-3)

    print("KERNEL_OK")
</pallas_src>

<mosaic_0001>
module attributes {stable_mosaic.version = 11 : i64} {
  func.func @_tier1_kernel(%arg0: memref<24x256xf32, #tpu.memory_space<vmem>>, %arg1: memref<256x512xf32, #tpu.memory_space<vmem>>, %arg2: memref<512x512xf32, #tpu.memory_space<vmem>>, %arg3: memref<2x256xf32, #tpu.memory_space<vmem>>, %arg4: memref<2x512xf32, #tpu.memory_space<vmem>>, %arg5: memref<4x256xf32, #tpu.memory_space<vmem>>, %arg6: memref<24x512xf32, #tpu.memory_space<vmem>>, %arg7: memref<24x2xf32, #tpu.memory_space<vmem>>, %arg8: memref<3x2xf32, #tpu.memory_space<vmem>>, %arg9: memref<24x2xf32, #tpu.memory_space<vmem>>) attributes {dimension_semantics = [], scalar_prefetch = 0 : i64, scratch_operands = 0 : i64, tpu.core_type = #tpu.core_type<tc>} {
    %c0 = arith.constant 0 : index
    %c0_0 = arith.constant 0 : index
    %0 = vector.load %arg0[%c0, %c0_0] : memref<24x256xf32, #tpu.memory_space<vmem>>, vector<24x256xf32>
    %c0_1 = arith.constant 0 : index
    %c0_2 = arith.constant 0 : index
    %1 = vector.load %arg1[%c0_1, %c0_2] : memref<256x512xf32, #tpu.memory_space<vmem>>, vector<256x512xf32>
    %cst = arith.constant dense<0.000000e+00> : vector<24x512xf32>
    %2 = tpu.matmul %0, %1, %cst {dimension_numbers = #tpu.dot_dimension_numbers<[1], [0], [0], [1], [0, 0, 1, 1], [], []>} : vector<24x256xf32>, vector<256x512xf32>, vector<24x512xf32> -> vector<24x512xf32>
    %cst_3 = arith.constant 0.000000e+00 : f32
    %3 = vector.broadcast %cst_3 : f32 to vector<24x512xf32>
    %4 = arith.maximumf %2, %3 : vector<24x512xf32>
    %c0_4 = arith.constant 0 : index
    %c0_5 = arith.constant 0 : index
    %5 = vector.load %arg6[%c0_4, %c0_5] : memref<24x512xf32, #tpu.memory_space<vmem>>, vector<24x512xf32>
    tpu.vector_store %arg6[%c0_4, %c0_5], %4 {strides = array<i32>} : memref<24x512xf32, #tpu.memory_space<vmem>>, vector<24x512xf32>,
    %c0_6 = arith.constant 0 : index
    %c0_7 = arith.constant 0 : index
    %6 = vector.load %arg2[%c0_6, %c0_7] : memref<512x512xf32, #tpu.memory_space<vmem>>, vector<512x512xf32>
    %cst_8 = arith.constant dense<0.000000e+00> : vector<24x512xf32>
    %7 = tpu.matmul %4, %6, %cst_8 {dimension_numbers = #tpu.dot_dimension_numbers<[1], [0], [0], [1], [0, 0, 1, 1], [], []>} : vector<24x512xf32>, vector<512x512xf32>, vector<24x512xf32> -> vector<24x512xf32>
    %8 = vector.extract_strided_slice %7 {offsets = [0, 0], sizes = [24, 256], strides = [1, 1]} : vector<24x512xf32> to vector<24x256xf32>
    %c0_9 = arith.constant 0 : index
    %c0_10 = arith.constant 0 : index
    %9 = vector.load %arg5[%c0_9, %c0_10] : memref<4x256xf32, #tpu.memory_space<vmem>>, vector<1x256xf32>
    %10 = vector.broadcast %9 : vector<1x256xf32> to vector<24x256xf32>
    %11 = arith.addf %8, %10 : vector<24x256xf32>
    %12 = math.tanh %11 : vector<24x256xf32>
    %13 = vector.extract_strided_slice %7 {offsets = [0, 256], sizes = [24, 256], strides = [1, 1]} : vector<24x512xf32> to vector<24x256xf32>
    %c1 = arith.constant 1 : index
    %c0_11 = arith.constant 0 : index
    %14 = vector.load %arg5[%c1, %c0_11] : memref<4x256xf32, #tpu.memory_space<vmem>>, vector<1x256xf32>
    %15 = vector.broadcast %14 : vector<1x256xf32> to vector<24x256xf32>
    %16 = arith.addf %13, %15 : vector<24x256xf32>
    %17 = arith.negf %16 : vector<24x256xf32>
    %18 = math.exp %17 : vector<24x256xf32>
    %cst_12 = arith.constant 1.000000e+00 : f32
    %19 = vector.broadcast %cst_12 : f32 to vector<24x256xf32>
    %20 = arith.addf %19, %18 : vector<24x256xf32>
    %21 = arith.divf %19, %20 : vector<24x256xf32>
    %22 = arith.mulf %12, %21 : vector<24x256xf32>
    %c2 = arith.constant 2 : index
    %c0_13 = arith.constant 0 : index
    %23 = vector.load %arg5[%c2, %c0_13] : memref<4x256xf32, #tpu.memory_space<vmem>>, vector<1x2xf32>
    %c3 = arith.constant 3 : index
    %c0_14 = arith.constant 0 : index
    %24 = vector.load %arg5[%c3, %c0_14] : memref<4x256xf32, #tpu.memory_space<vmem>>, vector<1x2xf32>
    %c0_15 = arith.constant 0 : index
    %c0_16 = arith.constant 0 : index
    %25 = vector.load %arg3[%c0_15, %c0_16] : memref<2x256xf32, #tpu.memory_space<vmem>>, vector<1x256xf32>
    %c0_17 = arith.constant 0 : index
    %c0_18 = arith.constant 0 : index
    %26 = vector.load %arg4[%c0_17, %c0_18] : memref<2x512xf32, #tpu.memory_space<vmem>>, vector<1x512xf32>
    %27 = vector.broadcast %25 : vector<1x256xf32> to vector<24x256xf32>
    %28 = arith.mulf %22, %27 : vector<24x256xf32>
    %cst_19 = arith.constant dense<0.000000e+00> : vector<24xf32>
    %29 = vector.multi_reduction <add>, %28, %cst_19 [1] : vector<24x256xf32> to vector<24xf32>
    %30 = vector.shape_cast %29 : vector<24xf32> to vector<24x1xf32>
    %31 = vector.broadcast %26 : vector<1x512xf32> to vector<24x512xf32>
    %32 = arith.mulf %4, %31 : vector<24x512xf32>
    %cst_20 = arith.constant dense<0.000000e+00> : vector<24xf32>
    %33 = vector.multi_reduction <add>, %32, %cst_20 [1] : vector<24x512xf32> to vector<24xf32>
    %34 = vector.shape_cast %33 : vector<24xf32> to vector<24x1xf32>
    %c1_21 = arith.constant 1 : index
    %c0_22 = arith.constant 0 : index
    %35 = vector.load %arg3[%c1_21, %c0_22] : memref<2x256xf32, #tpu.memory_space<vmem>>, vector<1x256xf32>
    %c1_23 = arith.constant 1 : index
    %c0_24 = arith.constant 0 : index
    %36 = vector.load %arg4[%c1_23, %c0_24] : memref<2x512xf32, #tpu.memory_space<vmem>>, vector<1x512xf32>
    %37 = vector.broadcast %35 : vector<1x256xf32> to vector<24x256xf32>
    %38 = arith.mulf %22, %37 : vector<24x256xf32>
    %cst_25 = arith.constant dense<0.000000e+00> : vector<24xf32>
    %39 = vector.multi_reduction <add>, %38, %cst_25 [1] : vector<24x256xf32> to vector<24xf32>
    %40 = vector.shape_cast %39 : vector<24xf32> to vector<24x1xf32>
    %41 = vector.broadcast %36 : vector<1x512xf32> to vector<24x512xf32>
    %42 = arith.mulf %4, %41 : vector<24x512xf32>
    %cst_26 = arith.constant dense<0.000000e+00> : vector<24xf32>
    %43 = vector.multi_reduction <add>, %42, %cst_26 [1] : vector<24x512xf32> to vector<24xf32>
    %44 = vector.shape_cast %43 : vector<24xf32> to vector<24x1xf32>
    %45 = tpu.concatenate %30, %40 in 1 : vector<24x1xf32>, vector<24x1xf32> -> vector<24x2xf32>
    %46 = vector.broadcast %23 : vector<1x2xf32> to vector<24x2xf32>
    %47 = arith.addf %45, %46 : vector<24x2xf32>
    %48 = tpu.concatenate %34, %44 in 1 : vector<24x1xf32>, vector<24x1xf32> -> vector<24x2xf32>
    %c0_27 = arith.constant 0 : index
    %c0_28 = arith.constant 0 : index
    %49 = vector.load %arg7[%c0_27, %c0_28] : memref<24x2xf32, #tpu.memory_space<vmem>>, vector<24x2xf32>
    tpu.vector_store %arg7[%c0_27, %c0_28], %47 {strides = array<i32>} : memref<24x2xf32, #tpu.memory_space<vmem>>, vector<24x2xf32>,
    %50 = tpu.iota {dimensions = array<i32: 0>} : vector<8x2xi32>
    %51 = tpu.iota {dimensions = array<i32: 1>} : vector<8x2xi32>
    %52 = arith.cmpi eq, %50, %51 : vector<8x2xi32>
    %53 = vector.extract_strided_slice %47 {offsets = [0, 0], sizes = [8, 2], strides = [1, 1]} : vector<24x2xf32> to vector<8x2xf32>
    %54 = vector.extract_strided_slice %48 {offsets = [0, 0], sizes = [8, 2], strides = [1, 1]} : vector<24x2xf32> to vector<8x2xf32>
    %cst_29 = arith.constant dense<0xFF800000> : vector<2xf32>
    %55 = vector.multi_reduction <maximumf>, %53, %cst_29 [0] : vector<8x2xf32> to vector<2xf32>
    %56 = vector.shape_cast %55 : vector<2xf32> to vector<1x2xf32>
    %57 = vector.broadcast %56 : vector<1x2xf32> to vector<8x2xf32>
    %58 = arith.subf %53, %57 : vector<8x2xf32>
    %59 = math.exp %58 : vector<8x2xf32>
    %cst_30 = arith.constant dense<0.000000e+00> : vector<2xf32>
    %60 = vector.multi_reduction <add>, %59, %cst_30 [0] : vector<8x2xf32> to vector<2xf32>
    %61 = vector.shape_cast %60 : vector<2xf32> to vector<1x2xf32>
    %62 = vector.broadcast %61 : vector<1x2xf32> to vector<8x2xf32>
    %63 = arith.divf %59, %62 : vector<8x2xf32>
    %64 = arith.mulf %63, %54 : vector<8x2xf32>
    %65 = vector.extract_strided_slice %63 {offsets = [0, 1], sizes = [8, 1], strides = [1, 1]} : vector<8x2xf32> to vector<8x1xf32>
    %66 = vector.broadcast %65 : vector<8x1xf32> to vector<8x2xf32>
    %67 = arith.mulf %66, %54 : vector<8x2xf32>
    %cst_31 = arith.constant 0.000000e+00 : f32
    %68 = vector.broadcast %cst_31 : f32 to vector<8x2xf32>
    %69 = arith.select %52, %67, %68 : vector<8x2xi1>, vector<8x2xf32>
    %cst_32 = arith.constant dense<0.000000e+00> : vector<2xf32>
    %70 = vector.multi_reduction <add>, %69, %cst_32 [0] : vector<8x2xf32> to vector<2xf32>
    %71 = vector.shape_cast %70 : vector<2xf32> to vector<1x2xf32>
    %72 = arith.addf %71, %24 : vector<1x2xf32>
    %73 = vector.extract_strided_slice %47 {offsets = [8, 0], sizes = [8, 2], strides = [1, 1]} : vector<24x2xf32> to vector<8x2xf32>
    %74 = vector.extract_strided_slice %48 {offsets = [8, 0], sizes = [8, 2], strides = [1, 1]} : vector<24x2xf32> to vector<8x2xf32>
    %cst_33 = arith.constant dense<0xFF800000> : vector<2xf32>
    %75 = vector.multi_reduction <maximumf>, %73, %cst_33 [0] : vector<8x2xf32> to vector<2xf32>
    %76 = vector.shape_cast %75 : vector<2xf32> to vector<1x2xf32>
    %77 = vector.broadcast %76 : vector<1x2xf32> to vector<8x2xf32>
    %78 = arith.subf %73, %77 : vector<8x2xf32>
    %79 = math.exp %78 : vector<8x2xf32>
    %cst_34 = arith.constant dense<0.000000e+00> : vector<2xf32>
    %80 = vector.multi_reduction <add>, %79, %cst_34 [0] : vector<8x2xf32> to vector<2xf32>
    %81 = vector.shape_cast %80 : vector<2xf32> to vector<1x2xf32>
    %82 = vector.broadcast %81 : vector<1x2xf32> to vector<8x2xf32>
    %83 = arith.divf %79, %82 : vector<8x2xf32>
    %84 = arith.mulf %83, %74 : vector<8x2xf32>
    %85 = vector.extract_strided_slice %83 {offsets = [0, 1], sizes = [8, 1], strides = [1, 1]} : vector<8x2xf32> to vector<8x1xf32>
    %86 = vector.broadcast %85 : vector<8x1xf32> to vector<8x2xf32>
    %87 = arith.mulf %86, %74 : vector<8x2xf32>
    %cst_35 = arith.constant 0.000000e+00 : f32
    %88 = vector.broadcast %cst_35 : f32 to vector<8x2xf32>
    %89 = arith.select %52, %87, %88 : vector<8x2xi1>, vector<8x2xf32>
    %cst_36 = arith.constant dense<0.000000e+00> : vector<2xf32>
    %90 = vector.multi_reduction <add>, %89, %cst_36 [0] : vector<8x2xf32> to vector<2xf32>
    %91 = vector.shape_cast %90 : vector<2xf32> to vector<1x2xf32>
    %92 = arith.addf %91, %24 : vector<1x2xf32>
    %93 = vector.extract_strided_slice %47 {offsets = [16, 0], sizes = [8, 2], strides = [1, 1]} : vector<24x2xf32> to vector<8x2xf32>
    %94 = vector.extract_strided_slice %48 {offsets = [16, 0], sizes = [8, 2], strides = [1, 1]} : vector<24x2xf32> to vector<8x2xf32>
    %cst_37 = arith.constant dense<0xFF800000> : vector<2xf32>
    %95 = vector.multi_reduction <maximumf>, %93, %cst_37 [0] : vector<8x2xf32> to vector<2xf32>
    %96 = vector.shape_cast %95 : vector<2xf32> to vector<1x2xf32>
    %97 = vector.broadcast %96 : vector<1x2xf32> to vector<8x2xf32>
    %98 = arith.subf %93, %97 : vector<8x2xf32>
    %99 = math.exp %98 : vector<8x2xf32>
    %cst_38 = arith.constant dense<0.000000e+00> : vector<2xf32>
    %100 = vector.multi_reduction <add>, %99, %cst_38 [0] : vector<8x2xf32> to vector<2xf32>
    %101 = vector.shape_cast %100 : vector<2xf32> to vector<1x2xf32>
    %102 = vector.broadcast %101 : vector<1x2xf32> to vector<8x2xf32>
    %103 = arith.divf %99, %102 : vector<8x2xf32>
    %104 = arith.mulf %103, %94 : vector<8x2xf32>
    %105 = vector.extract_strided_slice %103 {offsets = [0, 1], sizes = [8, 1], strides = [1, 1]} : vector<8x2xf32> to vector<8x1xf32>
    %106 = vector.broadcast %105 : vector<8x1xf32> to vector<8x2xf32>
    %107 = arith.mulf %106, %94 : vector<8x2xf32>
    %cst_39 = arith.constant 0.000000e+00 : f32
    %108 = vector.broadcast %cst_39 : f32 to vector<8x2xf32>
    %109 = arith.select %52, %107, %108 : vector<8x2xi1>, vector<8x2xf32>
    %cst_40 = arith.constant dense<0.000000e+00> : vector<2xf32>
    %110 = vector.multi_reduction <add>, %109, %cst_40 [0] : vector<8x2xf32> to vector<2xf32>
    %111 = vector.shape_cast %110 : vector<2xf32> to vector<1x2xf32>
    %112 = arith.addf %111, %24 : vector<1x2xf32>
    %113 = tpu.concatenate %64, %84, %104 in 0 : vector<8x2xf32>, vector<8x2xf32>, vector<8x2xf32> -> vector<24x2xf32>
    %c0_41 = arith.constant 0 : index
    %c0_42 = arith.constant 0 : index
    %114 = vector.load %arg9[%c0_41, %c0_42] : memref<24x2xf32, #tpu.memory_space<vmem>>, vector<24x2xf32>
    tpu.vector_store %arg9[%c0_41, %c0_42], %113 {strides = array<i32>} : memref<24x2xf32, #tpu.memory_space<vmem>>, vector<24x2xf32>,
    %115 = tpu.concatenate %72, %92, %112 in 0 : vector<1x2xf32>, vector<1x2xf32>, vector<1x2xf32> -> vector<3x2xf32>
    %c0_43 = arith.constant 0 : index
    %c0_44 = arith.constant 0 : index
    %116 = vector.load %arg8[%c0_43, %c0_44] : memref<3x2xf32, #tpu.memory_space<vmem>>, vector<3x2xf32>
    tpu.vector_store %arg8[%c0_43, %c0_44], %115 {strides = array<i32>} : memref<3x2xf32, #tpu.memory_space<vmem>>, vector<3x2xf32>,
    return
  }
}

</mosaic_0001>

<llo_original>
// kernel: tpu_custom_call.1
$region0: #{tpu_custom_call.1}
  #allocation0 [shape = 'u32[]', space=smem, size = 0x4, offset = 0x4, fixed_abs, tag = 'smem constant byte address 0x4 - core index']
  #allocation1 [shape = 'u32[144,128]{1,0:T(1,128)}', space=vmem, size = 0x12000, scoped, tag = 'internal scratch']
  %s0 = inlined_call_operand.hbm [shape: f32[24,256], index: 0, kind: input, shape index: {}]
  %s1 = inlined_call_operand.hbm [shape: f32[256,512], index: 1, kind: input, shape index: {}]
  %s2 = inlined_call_operand.hbm [shape: f32[512,512], index: 2, kind: input, shape index: {}]
  %s3 = inlined_call_operand.hbm [shape: f32[2,256], index: 3, kind: input, shape index: {}]
  %s4 = inlined_call_operand.vmem [shape: f32[2,512], index: 4, kind: input, shape index: {}]
  %s5 = inlined_call_operand.vmem [shape: f32[4,256], index: 5, kind: input, shape index: {}]
  %s6 = inlined_call_operand.hbm [shape: f32[24,512], index: 6, kind: output, shape index: {0}]
  %s7 = inlined_call_operand.vmem [shape: f32[24,2], index: 7, kind: output, shape index: {1}]
  %s8 = inlined_call_operand.vmem [shape: f32[3,2], index: 8, kind: output, shape index: {2}]
  %s9 = inlined_call_operand.vmem [shape: f32[24,2], index: 9, kind: output, shape index: {3}]
  %10 = xla_tuple %s6, %s7, %s8, %s9
  %s11 = sld [smem:[#allocation0]]
  $region74: #{tpu_custom_call.1} parent=0
    _
  %s13 = ssub.s32 1, %s11
  %s14 = scalar_select 0, %s13, %s11
  $region1: #{tpu_custom_call.1} parent=0
    #allocation2 [shape = 'u8[24576]{0}', space=vmem, size = 0x6000, scoped, tag = 'input window, operand 0, single buffered']
    #allocation3 [shape = 's32[1]{0}', space=sflag, size = 0x4, scoped, tag = 'scoped memory for tpu_custom_call.1']
    #allocation4 [shape = 's32[1]{0}', space=sflag, size = 0x4, scoped, tag = 'scoped memory for tpu_custom_call.1']
    #allocation5 [shape = 'u8[524288]{0}', space=vmem, size = 0x80000, scoped, tag = 'input window, operand 1, single buffered']
    #allocation6 [shape = 's32[1]{0}', space=sflag, size = 0x4, scoped, tag = 'scoped memory for tpu_custom_call.1']
    #allocation7 [shape = 'u8[1048576]{0}', space=vmem, size = 0x100000, scoped, tag = 'input window, operand 2, single buffered']
    #allocation8 [shape = 'u8[2048]{0}', space=vmem, size = 0x800, scoped, tag = 'input window, operand 3, single buffered']
    #allocation9 [shape = 's32[1]{0}', space=sflag, size = 0x4, scoped, tag = 'scoped memory for tpu_custom_call.1']
    #allocation10 [shape = 'u8[49152]{0}', space=vmem, size = 0xc000, scoped, tag = 'output window, operand 0, single buffered']
    %15 = vsyncpa [#allocation3], 0
    %16 = vsyncpa [#allocation6], 0
    %17 = vsyncpa [#allocation9], 0
    %18 = vsyncpa [#allocation4], 0
    // Predicated region
    $region2: #{tpu_custom_call.1} parent=1 // pred_check
      _
    $region3: #{tpu_custom_call.1} parent=1 // pred_check_branch
      %20 = sbr.rel (0) target = $region5
    $region4: #{tpu_custom_call.1} parent=1 // pred_region
      %s22 = ssub.s32 768, 768
      %23 = vsyncadd [#allocation3], %s22
      %s24 = sshll.u32 [#allocation2], 4
      %s25 = int_to_ptr.vmem [resolvable:$true] %s24
      %30 = dma.hbm_to_vmem [thread:$0]  %s0, 768, %s25, [#allocation3], 256, 256, 16
    $region5: #{tpu_custom_call.1} parent=1 // pred_fallthru
      _
    // Predicated region
    $region6: #{tpu_custom_call.1} parent=1 // pred_check
      _
    $region7: #{tpu_custom_call.1} parent=1 // pred_check_branch
      %32 = sbr.rel (0) target = $region9
    $region8: #{tpu_custom_call.1} parent=1 // pred_region
      %s34 = ssub.s32 16384, 16384
      %35 = vsyncadd [#allocation6], %s34
      %s36 = sshll.u32 [#allocation5], 4
      %s37 = int_to_ptr.vmem [resolvable:$true] %s36
      %42 = dma.hbm_to_vmem [thread:$0]  %s1, 16384, %s37, [#allocation6], 512, 512, 32
    $region9: #{tpu_custom_call.1} parent=1 // pred_fallthru
      _
    // Predicated region
    $region10: #{tpu_custom_call.1} parent=1 // pred_check
      _
    $region11: #{tpu_custom_call.1} parent=1 // pred_check_branch
      %44 = sbr.rel (0) target = $region13
    $region12: #{tpu_custom_call.1} parent=1 // pred_region
      %s46 = ssub.s32 32768, 32768
      %47 = vsyncadd [#allocation6], %s46
      %s48 = sshll.u32 [#allocation7], 4
      %s49 = int_to_ptr.vmem [resolvable:$true] %s48
      %54 = dma.hbm_to_vmem [thread:$0]  %s2, 32768, %s49, [#allocation6], 512, 512, 32
    $region13: #{tpu_custom_call.1} parent=1 // pred_fallthru
      _
    // Predicated region
    $region14: #{tpu_custom_call.1} parent=1 // pred_check
      _
    $region15: #{tpu_custom_call.1} parent=1 // pred_check_branch
      %56 = sbr.rel (0) target = $region17
    $region16: #{tpu_custom_call.1} parent=1 // pred_region
      %s58 = ssub.s32 64, 64
      %59 = vsyncadd [#allocation9], %s58
      %s61 = sshll.u32 [#allocation8], 4
      %s62 = int_to_ptr.vmem [resolvable:$true] %s61
      %64 = dma.hbm_to_vmem [thread:$0]  %s3, 64, %s62, [#allocation9]
    $region17: #{tpu_custom_call.1} parent=1 // pred_fallthru
      _
    // Predicated region
    $region18: #{tpu_custom_call.1} parent=1 // pred_check
      _
    $region19: #{tpu_custom_call.1} parent=1 // pred_check_branch
      %66 = sbr.rel (0) target = $region21
    $region20: #{tpu_custom_call.1} parent=1 // pred_region
      _
    $region21: #{tpu_custom_call.1} parent=1 // pred_fallthru
      _
    // Predicated region
    $region22: #{tpu_custom_call.1} parent=1 // pred_check
      _
    $region23: #{tpu_custom_call.1} parent=1 // pred_check_branch
      %68 = sbr.rel (0) target = $region25
    $region24: #{tpu_custom_call.1} parent=1 // pred_region
      _
    $region25: #{tpu_custom_call.1} parent=1 // pred_fallthru
      _
    // Predicated region
    $region26: #{tpu_custom_call.1} parent=1 // pred_check
      _
    $region27: #{tpu_custom_call.1} parent=1 // pred_check_branch
      %70 = sbr.rel (0) target = $region29
    $region28: #{tpu_custom_call.1} parent=1 // pred_region
      %71 = dma.done [#allocation3], 768
    $region29: #{tpu_custom_call.1} parent=1 // pred_fallthru
      _
    // Predicated region
    $region30: #{tpu_custom_call.1} parent=1 // pred_check
      _
    $region31: #{tpu_custom_call.1} parent=1 // pred_check_branch
      %73 = sbr.rel (0) target = $region33
    $region32: #{tpu_custom_call.1} parent=1 // pred_region
      %74 = dma.done [#allocation6], 16384
    $region33: #{tpu_custom_call.1} parent=1 // pred_fallthru
      _
    // Predicated region
    $region34: #{tpu_custom_call.1} parent=1 // pred_check
      _
    $region35: #{tpu_custom_call.1} parent=1 // pred_check_branch
      %76 = sbr.rel (0) target = $region37
    $region36: #{tpu_custom_call.1} parent=1 // pred_region
      %77 = dma.done [#allocation6], 32768
    $region37: #{tpu_custom_call.1} parent=1 // pred_fallthru
      _
    // Predicated region
    $region38: #{tpu_custom_call.1} parent=1 // pred_check
      _
    $region39: #{tpu_custom_call.1} parent=1 // pred_check_branch
      %79 = sbr.rel (0) target = $region41
    $region40: #{tpu_custom_call.1} parent=1 // pred_region
      %80 = dma.done [#allocation9], 64
    $region41: #{tpu_custom_call.1} parent=1 // pred_fallthru
      _
    %v81 = vld [vmem:[#allocation2] sm:$0xff]
    %v82 = vld [vmem:[#allocation2 + $0x8] sm:$0xff]
    %v83 = vld [vmem:[#allocation2 + $0x10] sm:$0xff]
    %v84 = vld [vmem:[#allocation2 + $0x18] sm:$0xff]
    %v85 = vld [vmem:[#allocation2 + $0x20] sm:$0xff]
    %v86 = vld [vmem:[#allocation2 + $0x28] sm:$0xff]
    %v87 = vld [vmem:[#allocation5] sm:$0xff]
    %v88 = vld [vmem:[#allocation5 + $0x8] sm:$0xff]
    %v89 = vld [vmem:[#allocation5 + $0x10] sm:$0xff]
    %v90 = vld [vmem:[#allocation5 + $0x18] sm:$0xff]
    %v91 = vld [vmem:[#allocation5 + $0x20] sm:$0xff]
    %v92 = vld [vmem:[#allocation5 + $0x28] sm:$0xff]
    %v93 = vld [vmem:[#allocation5 + $0x30] sm:$0xff]
    %v94 = vld [vmem:[#allocation5 + $0x38] sm:$0xff]
    %v95 = vld [vmem:[#allocation5 + $0x40] sm:$0xff]
    %v96 = vld [vmem:[#allocation5 + $0x48] sm:$0xff]
    %v97 = vld [vmem:[#allocation5 + $0x50] sm:$0xff]
    %v98 = vld [vmem:[#allocation5 + $0x58] sm:$0xff]
    %v99 = vld [vmem:[#allocation5 + $0x60] sm:$0xff]
    %v100 = vld [vmem:[#allocation5 + $0x68] sm:$0xff]
    %v101 = vld [vmem:[#allocation5 + $0x70] sm:$0xff]
    %v102 = vld [vmem:[#allocation5 + $0x78] sm:$0xff]
    %v103 = vld [vmem:[#allocation5 + $0x80] sm:$0xff]
    %v104 = vld [vmem:[#allocation5 + $0x88] sm:$0xff]
    %v105 = vld [vmem:[#allocation5 + $0x90] sm:$0xff]
    %v106 = vld [vmem:[#allocation5 + $0x98] sm:$0xff]
    %v107 = vld [vmem:[#allocation5 + $0xa0] sm:$0xff]
    %v108 = vld [vmem:[#allocation5 + $0xa8] sm:$0xff]
    %v109 = vld [vmem:[#allocation5 + $0xb0] sm:$0xff]
    %v110 = vld [vmem:[#allocation5 + $0xb8] sm:$0xff]
    %v111 = vld [vmem:[#allocation5 + $0xc0] sm:$0xff]
    %v112 = vld [vmem:[#allocation5 + $0xc8] sm:$0xff]
    %v113 = vld [vmem:[#allocation5 + $0xd0] sm:$0xff]
    %v114 = vld [vmem:[#allocation5 + $0xd8] sm:$0xff]
    %v115 = vld [vmem:[#allocation5 + $0xe0] sm:$0xff]
    %v116 = vld [vmem:[#allocation5 + $0xe8] sm:$0xff]
    %v117 = vld [vmem:[#allocation5 + $0xf0] sm:$0xff]
    %v118 = vld [vmem:[#allocation5 + $0xf8] sm:$0xff]
    %v119 = vld [vmem:[#allocation5 + $0x100] sm:$0xff]
    %v120 = vld [vmem:[#allocation5 + $0x108] sm:$0xff]
    %v121 = vld [vmem:[#allocation5 + $0x110] sm:$0xff]
    %v122 = vld [vmem:[#allocation5 + $0x118] sm:$0xff]
    %v123 = vld [vmem:[#allocation5 + $0x120] sm:$0xff]
    %v124 = vld [vmem:[#allocation5 + $0x128] sm:$0xff]
    %v125 = vld [vmem:[#allocation5 + $0x130] sm:$0xff]
    %v126 = vld [vmem:[#allocation5 + $0x138] sm:$0xff]
    %v127 = vld [vmem:[#allocation5 + $0x140] sm:$0xff]
    %v128 = vld [vmem:[#allocation5 + $0x148] sm:$0xff]
    %v129 = vld [vmem:[#allocation5 + $0x150] sm:$0xff]
    %v130 = vld [vmem:[#allocation5 + $0x158] sm:$0xff]
    %v131 = vld [vmem:[#allocation5 + $0x160] sm:$0xff]
    %v132 = vld [vmem:[#allocation5 + $0x168] sm:$0xff]
    %v133 = vld [vmem:[#allocation5 + $0x170] sm:$0xff]
    %v134 = vld [vmem:[#allocation5 + $0x178] sm:$0xff]
    %v135 = vld [vmem:[#allocation5 + $0x180] sm:$0xff]
    %v136 = vld [vmem:[#allocation5 + $0x188] sm:$0xff]
    %v137 = vld [vmem:[#allocation5 + $0x190] sm:$0xff]
    %v138 = vld [vmem:[#allocation5 + $0x198] sm:$0xff]
    %v139 = vld [vmem:[#allocation5 + $0x1a0] sm:$0xff]
    %v140 = vld [vmem:[#allocation5 + $0x1a8] sm:$0xff]
    %v141 = vld [vmem:[#allocation5 + $0x1b0] sm:$0xff]
    %v142 = vld [vmem:[#allocation5 + $0x1b8] sm:$0xff]
    %v143 = vld [vmem:[#allocation5 + $0x1c0] sm:$0xff]
    %v144 = vld [vmem:[#allocation5 + $0x1c8] sm:$0xff]
    %v145 = vld [vmem:[#allocation5 + $0x1d0] sm:$0xff]
    %v146 = vld [vmem:[#allocation5 + $0x1d8] sm:$0xff]
    %v147 = vld [vmem:[#allocation5 + $0x1e0] sm:$0xff]
    %v148 = vld [vmem:[#allocation5 + $0x1e8] sm:$0xff]
    %v149 = vld [vmem:[#allocation5 + $0x1f0] sm:$0xff]
    %v150 = vld [vmem:[#allocation5 + $0x1f8] sm:$0xff]
    %v151 = vld [vmem:[#allocation5 + $0x200] sm:$0xff]
    %v152 = vld [vmem:[#allocation5 + $0x208] sm:$0xff]
    %v153 = vld [vmem:[#allocation5 + $0x210] sm:$0xff]
    %v154 = vld [vmem:[#allocation5 + $0x218] sm:$0xff]
    %v155 = vld [vmem:[#allocation5 + $0x220] sm:$0xff]
    %v156 = vld [vmem:[#allocation5 + $0x228] sm:$0xff]
    %v157 = vld [vmem:[#allocation5 + $0x230] sm:$0xff]
    %v158 = vld [vmem:[#allocation5 + $0x238] sm:$0xff]
    %v159 = vld [vmem:[#allocation5 + $0x240] sm:$0xff]
    %v160 = vld [vmem:[#allocation5 + $0x248] sm:$0xff]
    %v161 = vld [vmem:[#allocation5 + $0x250] sm:$0xff]
    %v162 = vld [vmem:[#allocation5 + $0x258] sm:$0xff]
    %v163 = vld [vmem:[#allocation5 + $0x260] sm:$0xff]
    %v164 = vld [vmem:[#allocation5 + $0x268] sm:$0xff]
    %v165 = vld [vmem:[#allocation5 + $0x270] sm:$0xff]
    %v166 = vld [vmem:[#allocation5 + $0x278] sm:$0xff]
    %v167 = vld [vmem:[#allocation5 + $0x280] sm:$0xff]
    %v168 = vld [vmem:[#allocation5 + $0x288] sm:$0xff]
    %v169 = vld [vmem:[#allocation5 + $0x290] sm:$0xff]
    %v170 = vld [vmem:[#allocation5 + $0x298] sm:$0xff]
    %v171 = vld [vmem:[#allocation5 + $0x2a0] sm:$0xff]
    %v172 = vld [vmem:[#allocation5 + $0x2a8] sm:$0xff]
    %v173 = vld [vmem:[#allocation5 + $0x2b0] sm:$0xff]
    %v174 = vld [vmem:[#allocation5 + $0x2b8] sm:$0xff]
    %v175 = vld [vmem:[#allocation5 + $0x2c0] sm:$0xff]
    %v176 = vld [vmem:[#allocation5 + $0x2c8] sm:$0xff]
    %v177 = vld [vmem:[#allocation5 + $0x2d0] sm:$0xff]
    %v178 = vld [vmem:[#allocation5 + $0x2d8] sm:$0xff]
    %v179 = vld [vmem:[#allocation5 + $0x2e0] sm:$0xff]
    %v180 = vld [vmem:[#allocation5 + $0x2e8] sm:$0xff]
    %v181 = vld [vmem:[#allocation5 + $0x2f0] sm:$0xff]
    %v182 = vld [vmem:[#allocation5 + $0x2f8] sm:$0xff]
    %v183 = vld [vmem:[#allocation5 + $0x300] sm:$0xff]
    %v184 = vld [vmem:[#allocation5 + $0x308] sm:$0xff]
    %v185 = vld [vmem:[#allocation5 + $0x310] sm:$0xff]
    %v186 = vld [vmem:[#allocation5 + $0x318] sm:$0xff]
    %v187 = vld [vmem:[#allocation5 + $0x320] sm:$0xff]
    %v188 = vld [vmem:[#allocation5 + $0x328] sm:$0xff]
    %v189 = vld [vmem:[#allocation5 + $0x330] sm:$0xff]
    %v190 = vld [vmem:[#allocation5 + $0x338] sm:$0xff]
    %v191 = vld [vmem:[#allocation5 + $0x340] sm:$0xff]
    %v192 = vld [vmem:[#allocation5 + $0x348] sm:$0xff]
    %v193 = vld [vmem:[#allocation5 + $0x350] sm:$0xff]
    %v194 = vld [vmem:[#allocation5 + $0x358] sm:$0xff]
    %v195 = vld [vmem:[#allocation5 + $0x360] sm:$0xff]
    %v196 = vld [vmem:[#allocation5 + $0x368] sm:$0xff]
    %v197 = vld [vmem:[#allocation5 + $0x370] sm:$0xff]
    %v198 = vld [vmem:[#allocation5 + $0x378] sm:$0xff]
    %v199 = vld [vmem:[#allocation5 + $0x380] sm:$0xff]
    %v200 = vld [vmem:[#allocation5 + $0x388] sm:$0xff]
    %v201 = vld [vmem:[#allocation5 + $0x390] sm:$0xff]
    %v202 = vld [vmem:[#allocation5 + $0x398] sm:$0xff]
    %v203 = vld [vmem:[#allocation5 + $0x3a0] sm:$0xff]
    %v204 = vld [vmem:[#allocation5 + $0x3a8] sm:$0xff]
    %v205 = vld [vmem:[#allocation5 + $0x3b0] sm:$0xff]
    %v206 = vld [vmem:[#allocation5 + $0x3b8] sm:$0xff]
    %v207 = vld [vmem:[#allocation5 + $0x3c0] sm:$0xff]
    %v208 = vld [vmem:[#allocation5 + $0x3c8] sm:$0xff]
    %v209 = vld [vmem:[#allocation5 + $0x3d0] sm:$0xff]
    %v210 = vld [vmem:[#allocation5 + $0x3d8] sm:$0xff]
    %v211 = vld [vmem:[#allocation5 + $0x3e0] sm:$0xff]
    %v212 = vld [vmem:[#allocation5 + $0x3e8] sm:$0xff]
    %v213 = vld [vmem:[#allocation5 + $0x3f0] sm:$0xff]
    %v214 = vld [vmem:[#allocation5 + $0x3f8] sm:$0xff]
    %215 = vmatprep.subr.mxu0 %v88
    %216 = vmatpush1.msra.mxu0 %v87
    %217 = vmatprep.subr.mxu0 %v92
    %218 = vmatpush1.msra.mxu0 %v91
    %219 = vmatprep.subr.mxu0 %v96
    %220 = vmatpush1.msra.mxu0 %v95
    %221 = vmatprep.subr.mxu0 %v100
    %222 = vmatpush1.msra.mxu0 %v99
    %223 = vmatprep.subr.mxu0 %v104
    %224 = vmatpush1.msra.mxu0 %v103
    %225 = vmatprep.subr.mxu0 %v108
    %226 = vmatpush1.msra.mxu0 %v107
    %227 = vmatprep.subr.mxu0 %v112
    %228 = vmatpush1.msra.mxu0 %v111
    %229 = vmatprep.subr.mxu0 %v116
    %230 = vmatpush1.msra.mxu0 %v115
    %231 = vmatprep.subr.mxu0 %v120
    %232 = vmatpush1.msra.mxu0 %v119
    %233 = vmatprep.subr.mxu0 %v124
    %234 = vmatpush1.msra.mxu0 %v123
    %235 = vmatprep.subr.mxu0 %v128
    %236 = vmatpush1.msra.mxu0 %v127
    %237 = vmatprep.subr.mxu0 %v132
    %238 = vmatpush1.msra.mxu0 %v131
    %239 = vmatprep.subr.mxu0 %v136
    %240 = vmatpush1.msra.mxu0 %v135
    %241 = vmatprep.subr.mxu0 %v140
    %242 = vmatpush1.msra.mxu0 %v139
    %243 = vmatprep.subr.mxu0 %v144
    %244 = vmatpush1.msra.mxu0 %v143
    %245 = vmatprep.subr.mxu0 %v148
    %246 = vmatpush1.msra.mxu0 %v147
    %247 = vmatprep.subr.mxu0 %v152
    %248 = vmatpush1.msra.mxu0 %v151
    %249 = vmatprep.subr.mxu0 %v156
    %250 = vmatpush1.msra.mxu0 %v155
    %251 = vmatprep.subr.mxu0 %v160
    %252 = vmatpush1.msra.mxu0 %v159
    %253 = vmatprep.subr.mxu0 %v164
    %254 = vmatpush1.msra.mxu0 %v163
    %255 = vmatprep.subr.mxu0 %v168
    %256 = vmatpush1.msra.mxu0 %v167
    %257 = vmatprep.subr.mxu0 %v172
    %258 = vmatpush1.msra.mxu0 %v171
    %259 = vmatprep.subr.mxu0 %v176
    %260 = vmatpush1.msra.mxu0 %v175
    %261 = vmatprep.subr.mxu0 %v180
    %262 = vmatpush1.msra.mxu0 %v179
    %263 = vmatprep.subr.mxu0 %v184
    %264 = vmatpush1.msra.mxu0 %v183
    %265 = vmatprep.subr.mxu0 %v188
    %266 = vmatpush1.msra.mxu0 %v187
    %267 = vmatprep.subr.mxu0 %v192
    %268 = vmatpush1.msra.mxu0 %v191
    %269 = vmatprep.subr.mxu0 %v196
    %270 = vmatpush1.msra.mxu0 %v195
    %271 = vmatprep.subr.mxu0 %v200
    %272 = vmatpush1.msra.mxu0 %v199
    %273 = vmatprep.subr.mxu0 %v204
    %274 = vmatpush1.msra.mxu0 %v203
    %275 = vmatprep.subr.mxu0 %v208
    %276 = vmatpush1.msra.mxu0 %v207
    %277 = vmatprep.subr.mxu0 %v212
    %278 = vmatpush1.msra.mxu0 %v211
    %279 = vmatprep.mubr.f32.mxu0 %v82
    %280 = vmatmul.mubr.f32.gmra.mrb[0].mxu0 %v81
    %v281 = vpop.f32.mrb[0].mxu0
    %v282 = vadd.f32 0.0, %v281
    %v283 = vpop.f32.mrb[0].mxu0
    %v284 = vadd.f32 0.0, %v283
    %285 = vmatprep.mubr.f32.mxu0 %v84
    %286 = vmatmul.mubr.f32.gmra.mrb[0].mxu0 %v83
    %v287 = vpop.f32.mrb[0].mxu0
    %v288 = vadd.f32 0.0, %v287
    %v289 = vpop.f32.mrb[0].mxu0
    %v290 = vadd.f32 0.0, %v289
    %291 = vmatprep.mubr.f32.mxu0 %v86
    %292 = vmatmul.mubr.f32.gmra.mrb[0].mxu0 %v85
    %v293 = vpop.f32.mrb[0].mxu0
    %v294 = vadd.f32 0.0, %v293
    %v295 = vpop.f32.mrb[0].mxu0
    %v296 = vadd.f32 0.0, %v295
    %297 = vdwg.mxu0
    %298 = vmatprep.subr.mxu0 %v90
    %299 = vmatpush1.msra.mxu0 %v89
    %300 = vmatprep.subr.mxu0 %v94
    %301 = vmatpush1.msra.mxu0 %v93
    %302 = vmatprep.subr.mxu0 %v98
    %303 = vmatpush1.msra.mxu0 %v97
    %304 = vmatprep.subr.mxu0 %v102
    %305 = vmatpush1.msra.mxu0 %v101
    %306 = vmatprep.subr.mxu0 %v106
    %307 = vmatpush1.msra.mxu0 %v105
    %308 = vmatprep.subr.mxu0 %v110
    %309 = vmatpush1.msra.mxu0 %v109
    %310 = vmatprep.subr.mxu0 %v114
    %311 = vmatpush1.msra.mxu0 %v113
    %312 = vmatprep.subr.mxu0 %v118
    %313 = vmatpush1.msra.mxu0 %v117
    %314 = vmatprep.subr.mxu0 %v122
    %315 = vmatpush1.msra.mxu0 %v121
    %316 = vmatprep.subr.mxu0 %v126
    %317 = vmatpush1.msra.mxu0 %v125
    %318 = vmatprep.subr.mxu0 %v130
    %319 = vmatpush1.msra.mxu0 %v129
    %320 = vmatprep.subr.mxu0 %v134
    %321 = vmatpush1.msra.mxu0 %v133
    %322 = vmatprep.subr.mxu0 %v138
    %323 = vmatpush1.msra.mxu0 %v137
    %324 = vmatprep.subr.mxu0 %v142
    %325 = vmatpush1.msra.mxu0 %v141
    %326 = vmatprep.subr.mxu0 %v146
    %327 = vmatpush1.msra.mxu0 %v145
    %328 = vmatprep.subr.mxu0 %v150
    %329 = vmatpush1.msra.mxu0 %v149
    %330 = vmatprep.subr.mxu0 %v154
    %331 = vmatpush1.msra.mxu0 %v153
    %332 = vmatprep.subr.mxu0 %v158
    %333 = vmatpush1.msra.mxu0 %v157
    %334 = vmatprep.subr.mxu0 %v162
    %335 = vmatpush1.msra.mxu0 %v161
    %336 = vmatprep.subr.mxu0 %v166
    %337 = vmatpush1.msra.mxu0 %v165
    %338 = vmatprep.subr.mxu0 %v170
    %339 = vmatpush1.msra.mxu0 %v169
    %340 = vmatprep.subr.mxu0 %v174
    %341 = vmatpush1.msra.mxu0 %v173
    %342 = vmatprep.subr.mxu0 %v178
    %343 = vmatpush1.msra.mxu0 %v177
    %344 = vmatprep.subr.mxu0 %v182
    %345 = vmatpush1.msra.mxu0 %v181
    %346 = vmatprep.subr.mxu0 %v186
    %347 = vmatpush1.msra.mxu0 %v185
    %348 = vmatprep.subr.mxu0 %v190
    %349 = vmatpush1.msra.mxu0 %v189
    %350 = vmatprep.subr.mxu0 %v194
    %351 = vmatpush1.msra.mxu0 %v193
    %352 = vmatprep.subr.mxu0 %v198
    %353 = vmatpush1.msra.mxu0 %v197
    %354 = vmatprep.subr.mxu0 %v202
    %355 = vmatpush1.msra.mxu0 %v201
    %356 = vmatprep.subr.mxu0 %v206
    %357 = vmatpush1.msra.mxu0 %v205
    %358 = vmatprep.subr.mxu0 %v210
    %359 = vmatpush1.msra.mxu0 %v209
    %360 = vmatprep.subr.mxu0 %v214
    %361 = vmatpush1.msra.mxu0 %v213
    %362 = vmatprep.mubr.f32.mxu0 %v82
    %363 = vmatmul.mubr.f32.gmra.mrb[0].mxu0 %v81
    %v364 = vpop.f32.mrb[0].mxu0
    %v365 = vadd.f32 0.0, %v364
    %v366 = vpop.f32.mrb[0].mxu0
    %v367 = vadd.f32 0.0, %v366
    %368 = vmatprep.mubr.f32.mxu0 %v84
    %369 = vmatmul.mubr.f32.gmra.mrb[0].mxu0 %v83
    %v370 = vpop.f32.mrb[0].mxu0
    %v371 = vadd.f32 0.0, %v370
    %v372 = vpop.f32.mrb[0].mxu0
    %v373 = vadd.f32 0.0, %v372
    %374 = vmatprep.mubr.f32.mxu0 %v86
    %375 = vmatmul.mubr.f32.gmra.mrb[0].mxu0 %v85
    %v376 = vpop.f32.mrb[0].mxu0
    %v377 = vadd.f32 0.0, %v376
    %v378 = vpop.f32.mrb[0].mxu0
    %v379 = vadd.f32 0.0, %v378
    %380 = vdwg.mxu0
    %v381 = vmax.f32 %v282, 0.0
    %v382 = vmax.f32 %v284, 0.0
    %v383 = vmax.f32 %v365, 0.0
    %v384 = vmax.f32 %v367, 0.0
    %v385 = vmax.f32 %v288, 0.0
    %v386 = vmax.f32 %v290, 0.0
    %v387 = vmax.f32 %v371, 0.0
    %v388 = vmax.f32 %v373, 0.0
    %v389 = vmax.f32 %v294, 0.0
    %v390 = vmax.f32 %v296, 0.0
    %v391 = vmax.f32 %v377, 0.0
    %v392 = vmax.f32 %v379, 0.0
    %393 = vst [vmem:[#allocation10] sm:$0xff] %v381
    %394 = vst [vmem:[#allocation10 + $0x8] sm:$0xff] %v382
    %395 = vst [vmem:[#allocation10 + $0x10] sm:$0xff] %v383
    %396 = vst [vmem:[#allocation10 + $0x18] sm:$0xff] %v384
    %397 = vst [vmem:[#allocation10 + $0x20] sm:$0xff] %v385
    %398 = vst [vmem:[#allocation10 + $0x28] sm:$0xff] %v386
    %399 = vst [vmem:[#allocation10 + $0x30] sm:$0xff] %v387
    %400 = vst [vmem:[#allocation10 + $0x38] sm:$0xff] %v388
    %401 = vst [vmem:[#allocation10 + $0x40] sm:$0xff] %v389
    %402 = vst [vmem:[#allocation10 + $0x48] sm:$0xff] %v390
    %403 = vst [vmem:[#allocation10 + $0x50] sm:$0xff] %v391
    %404 = vst [vmem:[#allocation10 + $0x58] sm:$0xff] %v392
    %v405 = vld [vmem:[#allocation7] sm:$0xff]
    %v406 = vld [vmem:[#allocation7 + $0x8] sm:$0xff]
    %v407 = vld [vmem:[#allocation7 + $0x10] sm:$0xff]
    %v408 = vld [vmem:[#allocation7 + $0x18] sm:$0xff]
    %v409 = vld [vmem:[#allocation7 + $0x20] sm:$0xff]
    %v410 = vld [vmem:[#allocation7 + $0x28] sm:$0xff]
    %v411 = vld [vmem:[#allocation7 + $0x30] sm:$0xff]
    %v412 = vld [vmem:[#allocation7 + $0x38] sm:$0xff]
    %v413 = vld [vmem:[#allocation7 + $0x40] sm:$0xff]
    %v414 = vld [vmem:[#allocation7 + $0x48] sm:$0xff]
    %v415 = vld [vmem:[#allocation7 + $0x50] sm:$0xff]
    %v416 = vld [vmem:[#allocation7 + $0x58] sm:$0xff]
    %v417 = vld [vmem:[#allocation7 + $0x60] sm:$0xff]
    %v418 = vld [vmem:[#allocation7 + $0x68] sm:$0xff]
    %v419 = vld [vmem:[#allocation7 + $0x70] sm:$0xff]
    %v420 = vld [vmem:[#allocation7 + $0x78] sm:$0xff]
    %v421 = vld [vmem:[#allocation7 + $0x80] sm:$0xff]
    %v422 = vld [vmem:[#allocation7 + $0x88] sm:$0xff]
    %v423 = vld [vmem:[#allocation7 + $0x90] sm:$0xff]
    %v424 = vld [vmem:[#allocation7 + $0x98] sm:$0xff]
    %v425 = vld [vmem:[#allocation7 + $0xa0] sm:$0xff]
    %v426 = vld [vmem:[#allocation7 + $0xa8] sm:$0xff]
    %v427 = vld [vmem:[#allocation7 + $0xb0] sm:$0xff]
    %v428 = vld [vmem:[#allocation7 + $0xb8] sm:$0xff]
    %v429 = vld [vmem:[#allocation7 + $0xc0] sm:$0xff]
    %v430 = vld [vmem:[#allocation7 + $0xc8] sm:$0xff]
    %v431 = vld [vmem:[#allocation7 + $0xd0] sm:$0xff]
    %v432 = vld [vmem:[#allocation7 + $0xd8] sm:$0xff]
    %v433 = vld [vmem:[#allocation7 + $0xe0] sm:$0xff]
    %v434 = vld [vmem:[#allocation7 + $0xe8] sm:$0xff]
    %v435 = vld [vmem:[#allocation7 + $0xf0] sm:$0xff]
    %v436 = vld [vmem:[#allocation7 + $0xf8] sm:$0xff]
    %v437 = vld [vmem:[#allocation7 + $0x100] sm:$0xff]
    %v438 = vld [vmem:[#allocation7 + $0x108] sm:$0xff]
    %v439 = vld [vmem:[#allocation7 + $0x110] sm:$0xff]
    %v440 = vld [vmem:[#allocation7 + $0x118] sm:$0xff]
    %v441 = vld [vmem:[#allocation7 + $0x120] sm:$0xff]
    %v442 = vld [vmem:[#allocation7 + $0x128] sm:$0xff]
    %v443 = vld [vmem:[#allocation7 + $0x130] sm:$0xff]
    %v444 = vld [vmem:[#allocation7 + $0x138] sm:$0xff]
    %v445 = vld [vmem:[#allocation7 + $0x140] sm:$0xff]
    %v446 = vld [vmem:[#allocation7 + $0x148] sm:$0xff]
    %v447 = vld [vmem:[#allocation7 + $0x150] sm:$0xff]
    %v448 = vld [vmem:[#allocation7 + $0x158] sm:$0xff]
    %v449 = vld [vmem:[#allocation7 + $0x160] sm:$0xff]
    %v450 = vld [vmem:[#allocation7 + $0x168] sm:$0xff]
    %v451 = vld [vmem:[#allocation7 + $0x170] sm:$0xff]
    %v452 = vld [vmem:[#allocation7 + $0x178] sm:$0xff]
    %v453 = vld [vmem:[#allocation7 + $0x180] sm:$0xff]
    %v454 = vld [vmem:[#allocation7 + $0x188] sm:$0xff]
    %v455 = vld [vmem:[#allocation7 + $0x190] sm:$0xff]
    %v456 = vld [vmem:[#allocation7 + $0x198] sm:$0xff]
    %v457 = vld [vmem:[#allocation7 + $0x1a0] sm:$0xff]
    %v458 = vld [vmem:[#allocation7 + $0x1a8] sm:$0xff]
    %v459 = vld [vmem:[#allocation7 + $0x1b0] sm:$0xff]
    %v460 = vld [vmem:[#allocation7 + $0x1b8] sm:$0xff]
    %v461 = vld [vmem:[#allocation7 + $0x1c0] sm:$0xff]
    %v462 = vld [vmem:[#allocation7 + $0x1c8] sm:$0xff]
    %v463 = vld [vmem:[#allocation7 + $0x1d0] sm:$0xff]
    %v464 = vld [vmem:[#allocation7 + $0x1d8] sm:$0xff]
    %v465 = vld [vmem:[#allocation7 + $0x1e0] sm:$0xff]
    %v466 = vld [vmem:[#allocation7 + $0x1e8] sm:$0xff]
    %v467 = vld [vmem:[#allocation7 + $0x1f0] sm:$0xff]
    %v468 = vld [vmem:[#allocation7 + $0x1f8] sm:$0xff]
    %v469 = vld [vmem:[#allocation7 + $0x200] sm:$0xff]
    %v470 = vld [vmem:[#allocation7 + $0x208] sm:$0xff]
    %v471 = vld [vmem:[#allocation7 + $0x210] sm:$0xff]
    %v472 = vld [vmem:[#allocation7 + $0x218] sm:$0xff]
    %v473 = vld [vmem:[#allocation7 + $0x220] sm:$0xff]
    %v474 = vld [vmem:[#allocation7 + $0x228] sm:$0xff]
    %v475 = vld [vmem:[#allocation7 + $0x230] sm:$0xff]
    %v476 = vld [vmem:[#allocation7 + $0x238] sm:$0xff]
    %v477 = vld [vmem:[#allocation7 + $0x240] sm:$0xff]
    %v478 = vld [vmem:[#allocation7 + $0x248] sm:$0xff]
    %v479 = vld [vmem:[#allocation7 + $0x250] sm:$0xff]
    %v480 = vld [vmem:[#allocation7 + $0x258] sm:$0xff]
    %v481 = vld [vmem:[#allocation7 + $0x260] sm:$0xff]
    %v482 = vld [vmem:[#allocation7 + $0x268] sm:$0xff]
    %v483 = vld [vmem:[#allocation7 + $0x270] sm:$0xff]
    %v484 = vld [vmem:[#allocation7 + $0x278] sm:$0xff]
    %v485 = vld [vmem:[#allocation7 + $0x280] sm:$0xff]
    %v486 = vld [vmem:[#allocation7 + $0x288] sm:$0xff]
    %v487 = vld [vmem:[#allocation7 + $0x290] sm:$0xff]
    %v488 = vld [vmem:[#allocation7 + $0x298] sm:$0xff]
    %v489 = vld [vmem:[#allocation7 + $0x2a0] sm:$0xff]
    %v490 = vld [vmem:[#allocation7 + $0x2a8] sm:$0xff]
    %v491 = vld [vmem:[#allocation7 + $0x2b0] sm:$0xff]
    %v492 = vld [vmem:[#allocation7 + $0x2b8] sm:$0xff]
    %v493 = vld [vmem:[#allocation7 + $0x2c0] sm:$0xff]
    %v494 = vld [vmem:[#allocation7 + $0x2c8] sm:$0xff]
    %v495 = vld [vmem:[#allocation7 + $0x2d0] sm:$0xff]
    %v496 = vld [vmem:[#allocation7 + $0x2d8] sm:$0xff]
    %v497 = vld [vmem:[#allocation7 + $0x2e0] sm:$0xff]
    %v498 = vld [vmem:[#allocation7 + $0x2e8] sm:$0xff]
    %v499 = vld [vmem:[#allocation7 + $0x2f0] sm:$0xff]
    %v500 = vld [vmem:[#allocation7 + $0x2f8] sm:$0xff]
    %v501 = vld [vmem:[#allocation7 + $0x300] sm:$0xff]
    %v502 = vld [vmem:[#allocation7 + $0x308] sm:$0xff]
    %v503 = vld [vmem:[#allocation7 + $0x310] sm:$0xff]
    %v504 = vld [vmem:[#allocation7 + $0x318] sm:$0xff]
    %v505 = vld [vmem:[#allocation7 + $0x320] sm:$0xff]
    %v506 = vld [vmem:[#allocation7 + $0x328] sm:$0xff]
    %v507 = vld [vmem:[#allocation7 + $0x330] sm:$0xff]
    %v508 = vld [vmem:[#allocation7 + $0x338] sm:$0xff]
    %v509 = vld [vmem:[#allocation7 + $0x340] sm:$0xff]
    %v510 = vld [vmem:[#allocation7 + $0x348] sm:$0xff]
    %v511 = vld [vmem:[#allocation7 + $0x350] sm:$0xff]
    %v512 = vld [vmem:[#allocation7 + $0x358] sm:$0xff]
    %v513 = vld [vmem:[#allocation7 + $0x360] sm:$0xff]
    %v514 = vld [vmem:[#allocation7 + $0x368] sm:$0xff]
    %v515 = vld [vmem:[#allocation7 + $0x370] sm:$0xff]
    %v516 = vld [vmem:[#allocation7 + $0x378] sm:$0xff]
    %v517 = vld [vmem:[#allocation7 + $0x380] sm:$0xff]
    %v518 = vld [vmem:[#allocation7 + $0x388] sm:$0xff]
    %v519 = vld [vmem:[#allocation7 + $0x390] sm:$0xff]
    %v520 = vld [vmem:[#allocation7 + $0x398] sm:$0xff]
    %v521 = vld [vmem:[#allocation7 + $0x3a0] sm:$0xff]
    %v522 = vld [vmem:[#allocation7 + $0x3a8] sm:$0xff]
    %v523 = vld [vmem:[#allocation7 + $0x3b0] sm:$0xff]
    %v524 = vld [vmem:[#allocation7 + $0x3b8] sm:$0xff]
    %v525 = vld [vmem:[#allocation7 + $0x3c0] sm:$0xff]
    %v526 = vld [vmem:[#allocation7 + $0x3c8] sm:$0xff]
    %v527 = vld [vmem:[#allocation7 + $0x3d0] sm:$0xff]
    %v528 = vld [vmem:[#allocation7 + $0x3d8] sm:$0xff]
    %v529 = vld [vmem:[#allocation7 + $0x3e0] sm:$0xff]
    %v530 = vld [vmem:[#allocation7 + $0x3e8] sm:$0xff]
    %v531 = vld [vmem:[#allocation7 + $0x3f0] sm:$0xff]
    %v532 = vld [vmem:[#allocation7 + $0x3f8] sm:$0xff]
    %v533 = vld [vmem:[#allocation7 + $0x400] sm:$0xff]
    %v534 = vld [vmem:[#allocation7 + $0x408] sm:$0xff]
    %v535 = vld [vmem:[#allocation7 + $0x410] sm:$0xff]
    %v536 = vld [vmem:[#allocation7 + $0x418] sm:$0xff]
    %v537 = vld [vmem:[#allocation7 + $0x420] sm:$0xff]
    %v538 = vld [vmem:[#allocation7 + $0x428] sm:$0xff]
    %v539 = vld [vmem:[#allocation7 + $0x430] sm:$0xff]
    %v540 = vld [vmem:[#allocation7 + $0x438] sm:$0xff]
    %v541 = vld [vmem:[#allocation7 + $0x440] sm:$0xff]
    %v542 = vld [vmem:[#allocation7 + $0x448] sm:$0xff]
    %v543 = vld [vmem:[#allocation7 + $0x450] sm:$0xff]
    %v544 = vld [vmem:[#allocation7 + $0x458] sm:$0xff]
    %v545 = vld [vmem:[#allocation7 + $0x460] sm:$0xff]
    %v546 = vld [vmem:[#allocation7 + $0x468] sm:$0xff]
    %v547 = vld [vmem:[#allocation7 + $0x470] sm:$0xff]
    %v548 = vld [vmem:[#allocation7 + $0x478] sm:$0xff]
    %v549 = vld [vmem:[#allocation7 + $0x480] sm:$0xff]
    %v550 = vld [vmem:[#allocation7 + $0x488] sm:$0xff]
    %v551 = vld [vmem:[#allocation7 + $0x490] sm:$0xff]
    %v552 = vld [vmem:[#allocation7 + $0x498] sm:$0xff]
    %v553 = vld [vmem:[#allocation7 + $0x4a0] sm:$0xff]
    %v554 = vld [vmem:[#allocation7 + $0x4a8] sm:$0xff]
    %v555 = vld [vmem:[#allocation7 + $0x4b0] sm:$0xff]
    %v556 = vld [vmem:[#allocation7 + $0x4b8] sm:$0xff]
    %v557 = vld [vmem:[#allocation7 + $0x4c0] sm:$0xff]
    %v558 = vld [vmem:[#allocation7 + $0x4c8] sm:$0xff]
    %v559 = vld [vmem:[#allocation7 + $0x4d0] sm:$0xff]
    %v560 = vld [vmem:[#allocation7 + $0x4d8] sm:$0xff]
    %v561 = vld [vmem:[#allocation7 + $0x4e0] sm:$0xff]
    %v562 = vld [vmem:[#allocation7 + $0x4e8] sm:$0xff]
    %v563 = vld [vmem:[#allocation7 + $0x4f0] sm:$0xff]
    %v564 = vld [vmem:[#allocation7 + $0x4f8] sm:$0xff]
    %v565 = vld [vmem:[#allocation7 + $0x500] sm:$0xff]
    %v566 = vld [vmem:[#allocation7 + $0x508] sm:$0xff]
    %v567 = vld [vmem:[#allocation7 + $0x510] sm:$0xff]
    %v568 = vld [vmem:[#allocation7 + $0x518] sm:$0xff]
    %v569 = vld [vmem:[#allocation7 + $0x520] sm:$0xff]
    %v570 = vld [vmem:[#allocation7 + $0x528] sm:$0xff]
    %v571 = vld [vmem:[#allocation7 + $0x530] sm:$0xff]
    %v572 = vld [vmem:[#allocation7 + $0x538] sm:$0xff]
    %v573 = vld [vmem:[#allocation7 + $0x540] sm:$0xff]
    %v574 = vld [vmem:[#allocation7 + $0x548] sm:$0xff]
    %v575 = vld [vmem:[#allocation7 + $0x550] sm:$0xff]
    %v576 = vld [vmem:[#allocation7 + $0x558] sm:$0xff]
    %v577 = vld [vmem:[#allocation7 + $0x560] sm:$0xff]
    %v578 = vld [vmem:[#allocation7 + $0x568] sm:$0xff]
    %v579 = vld [vmem:[#allocation7 + $0x570] sm:$0xff]
    %v580 = vld [vmem:[#allocation7 + $0x578] sm:$0xff]
    %v581 = vld [vmem:[#allocation7 + $0x580] sm:$0xff]
    %v582 = vld [vmem:[#allocation7 + $0x588] sm:$0xff]
    %v583 = vld [vmem:[#allocation7 + $0x590] sm:$0xff]
    %v584 = vld [vmem:[#allocation7 + $0x598] sm:$0xff]
    %v585 = vld [vmem:[#allocation7 + $0x5a0] sm:$0xff]
    %v586 = vld [vmem:[#allocation7 + $0x5a8] sm:$0xff]
    %v587 = vld [vmem:[#allocation7 + $0x5b0] sm:$0xff]
    %v588 = vld [vmem:[#allocation7 + $0x5b8] sm:$0xff]
    %v589 = vld [vmem:[#allocation7 + $0x5c0] sm:$0xff]
    %v590 = vld [vmem:[#allocation7 + $0x5c8] sm:$0xff]
    %v591 = vld [vmem:[#allocation7 + $0x5d0] sm:$0xff]
    %v592 = vld [vmem:[#allocation7 + $0x5d8] sm:$0xff]
    %v593 = vld [vmem:[#allocation7 + $0x5e0] sm:$0xff]
    %v594 = vld [vmem:[#allocation7 + $0x5e8] sm:$0xff]
    %v595 = vld [vmem:[#allocation7 + $0x5f0] sm:$0xff]
    %v596 = vld [vmem:[#allocation7 + $0x5f8] sm:$0xff]
    %v597 = vld [vmem:[#allocation7 + $0x600] sm:$0xff]
    %v598 = vld [vmem:[#allocation7 + $0x608] sm:$0xff]
    %v599 = vld [vmem:[#allocation7 + $0x610] sm:$0xff]
    %v600 = vld [vmem:[#allocation7 + $0x618] sm:$0xff]
    %v601 = vld [vmem:[#allocation7 + $0x620] sm:$0xff]
    %v602 = vld [vmem:[#allocation7 + $0x628] sm:$0xff]
    %v603 = vld [vmem:[#allocation7 + $0x630] sm:$0xff]
    %v604 = vld [vmem:[#allocation7 + $0x638] sm:$0xff]
    %v605 = vld [vmem:[#allocation7 + $0x640] sm:$0xff]
    %v606 = vld [vmem:[#allocation7 + $0x648] sm:$0xff]
    %v607 = vld [vmem:[#allocation7 + $0x650] sm:$0xff]
    %v608 = vld [vmem:[#allocation7 + $0x658] sm:$0xff]
    %v609 = vld [vmem:[#allocation7 + $0x660] sm:$0xff]
    %v610 = vld [vmem:[#allocation7 + $0x668] sm:$0xff]
    %v611 = vld [vmem:[#allocation7 + $0x670] sm:$0xff]
    %v612 = vld [vmem:[#allocation7 + $0x678] sm:$0xff]
    %v613 = vld [vmem:[#allocation7 + $0x680] sm:$0xff]
    %v614 = vld [vmem:[#allocation7 + $0x688] sm:$0xff]
    %v615 = vld [vmem:[#allocation7 + $0x690] sm:$0xff]
    %v616 = vld [vmem:[#allocation7 + $0x698] sm:$0xff]
    %v617 = vld [vmem:[#allocation7 + $0x6a0] sm:$0xff]
    %v618 = vld [vmem:[#allocation7 + $0x6a8] sm:$0xff]
    %v619 = vld [vmem:[#allocation7 + $0x6b0] sm:$0xff]
    %v620 = vld [vmem:[#allocation7 + $0x6b8] sm:$0xff]
    %v621 = vld [vmem:[#allocation7 + $0x6c0] sm:$0xff]
    %v622 = vld [vmem:[#allocation7 + $0x6c8] sm:$0xff]
    %v623 = vld [vmem:[#allocation7 + $0x6d0] sm:$0xff]
    %v624 = vld [vmem:[#allocation7 + $0x6d8] sm:$0xff]
    %v625 = vld [vmem:[#allocation7 + $0x6e0] sm:$0xff]
    %v626 = vld [vmem:[#allocation7 + $0x6e8] sm:$0xff]
    %v627 = vld [vmem:[#allocation7 + $0x6f0] sm:$0xff]
    %v628 = vld [vmem:[#allocation7 + $0x6f8] sm:$0xff]
    %v629 = vld [vmem:[#allocation7 + $0x700] sm:$0xff]
    %v630 = vld [vmem:[#allocation7 + $0x708] sm:$0xff]
    %v631 = vld [vmem:[#allocation7 + $0x710] sm:$0xff]
    %v632 = vld [vmem:[#allocation7 + $0x718] sm:$0xff]
    %v633 = vld [vmem:[#allocation7 + $0x720] sm:$0xff]
    %v634 = vld [vmem:[#allocation7 + $0x728] sm:$0xff]
    %v635 = vld [vmem:[#allocation7 + $0x730] sm:$0xff]
    %v636 = vld [vmem:[#allocation7 + $0x738] sm:$0xff]
    %v637 = vld [vmem:[#allocation7 + $0x740] sm:$0xff]
    %v638 = vld [vmem:[#allocation7 + $0x748] sm:$0xff]
    %v639 = vld [vmem:[#allocation7 + $0x750] sm:$0xff]
    %v640 = vld [vmem:[#allocation7 + $0x758] sm:$0xff]
    %v641 = vld [vmem:[#allocation7 + $0x760] sm:$0xff]
    %v642 = vld [vmem:[#allocation7 + $0x768] sm:$0xff]
    %v643 = vld [vmem:[#allocation7 + $0x770] sm:$0xff]
    %v644 = vld [vmem:[#allocation7 + $0x778] sm:$0xff]
    %v645 = vld [vmem:[#allocation7 + $0x780] sm:$0xff]
    %v646 = vld [vmem:[#allocation7 + $0x788] sm:$0xff]
    %v647 = vld [vmem:[#allocation7 + $0x790] sm:$0xff]
    %v648 = vld [vmem:[#allocation7 + $0x798] sm:$0xff]
    %v649 = vld [vmem:[#allocation7 + $0x7a0] sm:$0xff]
    %v650 = vld [vmem:[#allocation7 + $0x7a8] sm:$0xff]
    %v651 = vld [vmem:[#allocation7 + $0x7b0] sm:$0xff]
    %v652 = vld [vmem:[#allocation7 + $0x7b8] sm:$0xff]
    %v653 = vld [vmem:[#allocation7 + $0x7c0] sm:$0xff]
    %v654 = vld [vmem:[#allocation7 + $0x7c8] sm:$0xff]
    %v655 = vld [vmem:[#allocation7 + $0x7d0] sm:$0xff]
    %v656 = vld [vmem:[#allocation7 + $0x7d8] sm:$0xff]
    %v657 = vld [vmem:[#allocation7 + $0x7e0] sm:$0xff]
    %v658 = vld [vmem:[#allocation7 + $0x7e8] sm:$0xff]
    %v659 = vld [vmem:[#allocation7 + $0x7f0] sm:$0xff]
    %v660 = vld [vmem:[#allocation7 + $0x7f8] sm:$0xff]
    %661 = vmatprep.subr.mxu0 %v406
    %662 = vmatpush1.msra.mxu0 %v405
    %663 = vmatprep.subr.mxu0 %v410
    %664 = vmatpush1.msra.mxu0 %v409
    %665 = vmatprep.subr.mxu0 %v414
    %666 = vmatpush1.msra.mxu0 %v413
    %667 = vmatprep.subr.mxu0 %v418
    %668 = vmatpush1.msra.mxu0 %v417
    %669 = vmatprep.subr.mxu0 %v422
    %670 = vmatpush1.msra.mxu0 %v421
    %671 = vmatprep.subr.mxu0 %v426
    %672 = vmatpush1.msra.mxu0 %v425
    %673 = vmatprep.subr.mxu0 %v430
    %674 = vmatpush1.msra.mxu0 %v429
    %675 = vmatprep.subr.mxu0 %v434
    %676 = vmatpush1.msra.mxu0 %v433
    %677 = vmatprep.subr.mxu0 %v438
    %678 = vmatpush1.msra.mxu0 %v437
    %679 = vmatprep.subr.mxu0 %v442
    %680 = vmatpush1.msra.mxu0 %v441
    %681 = vmatprep.subr.mxu0 %v446
    %682 = vmatpush1.msra.mxu0 %v445
    %683 = vmatprep.subr.mxu0 %v450
    %684 = vmatpush1.msra.mxu0 %v449
    %685 = vmatprep.subr.mxu0 %v454
    %686 = vmatpush1.msra.mxu0 %v453
    %687 = vmatprep.subr.mxu0 %v458
    %688 = vmatpush1.msra.mxu0 %v457
    %689 = vmatprep.subr.mxu0 %v462
    %690 = vmatpush1.msra.mxu0 %v461
    %691 = vmatprep.subr.mxu0 %v466
    %692 = vmatpush1.msra.mxu0 %v465
    %693 = vmatprep.subr.mxu0 %v470
    %694 = vmatpush1.msra.mxu0 %v469
    %695 = vmatprep.subr.mxu0 %v474
    %696 = vmatpush1.msra.mxu0 %v473
    %697 = vmatprep.subr.mxu0 %v478
    %698 = vmatpush1.msra.mxu0 %v477
    %699 = vmatprep.subr.mxu0 %v482
    %700 = vmatpush1.msra.mxu0 %v481
    %701 = vmatprep.subr.mxu0 %v486
    %702 = vmatpush1.msra.mxu0 %v485
    %703 = vmatprep.subr.mxu0 %v490
    %704 = vmatpush1.msra.mxu0 %v489
    %705 = vmatprep.subr.mxu0 %v494
    %706 = vmatpush1.msra.mxu0 %v493
    %707 = vmatprep.subr.mxu0 %v498
    %708 = vmatpush1.msra.mxu0 %v497
    %709 = vmatprep.subr.mxu0 %v502
    %710 = vmatpush1.msra.mxu0 %v501
    %711 = vmatprep.subr.mxu0 %v506
    %712 = vmatpush1.msra.mxu0 %v505
    %713 = vmatprep.subr.mxu0 %v510
    %714 = vmatpush1.msra.mxu0 %v509
    %715 = vmatprep.subr.mxu0 %v514
    %716 = vmatpush1.msra.mxu0 %v513
    %717 = vmatprep.subr.mxu0 %v518
    %718 = vmatpush1.msra.mxu0 %v517
    %719 = vmatprep.subr.mxu0 %v522
    %720 = vmatpush1.msra.mxu0 %v521
    %721 = vmatprep.subr.mxu0 %v526
    %722 = vmatpush1.msra.mxu0 %v525
    %723 = vmatprep.subr.mxu0 %v530
    %724 = vmatpush1.msra.mxu0 %v529
    %725 = vmatprep.mubr.f32.mxu0 %v382
    %726 = vmatmul.mubr.f32.gmra.mrb[0].mxu0 %v381
    %v727 = vpop.f32.mrb[0].mxu0
    %v728 = vadd.f32 0.0, %v727
    %v729 = vpop.f32.mrb[0].mxu0
    %v730 = vadd.f32 0.0, %v729
    %731 = vmatprep.mubr.f32.mxu0 %v386
    %732 = vmatmul.mubr.f32.gmra.mrb[0].mxu0 %v385
    %v733 = vpop.f32.mrb[0].mxu0
    %v734 = vadd.f32 0.0, %v733
    %v735 = vpop.f32.mrb[0].mxu0
    %v736 = vadd.f32 0.0, %v735
    %737 = vmatprep.mubr.f32.mxu0 %v390
    %738 = vmatmul.mubr.f32.gmra.mrb[0].mxu0 %v389
    %v739 = vpop.f32.mrb[0].mxu0
    %v740 = vadd.f32 0.0, %v739
    %v741 = vpop.f32.mrb[0].mxu0
    %v742 = vadd.f32 0.0, %v741
    %743 = vdwg.mxu0
    %744 = vmatprep.subr.mxu0 %v534
    %745 = vmatpush1.msra.mxu0 %v533
    %746 = vmatprep.subr.mxu0 %v538
    %747 = vmatpush1.msra.mxu0 %v537
    %748 = vmatprep.subr.mxu0 %v542
    %749 = vmatpush1.msra.mxu0 %v541
    %750 = vmatprep.subr.mxu0 %v546
    %751 = vmatpush1.msra.mxu0 %v545
    %752 = vmatprep.subr.mxu0 %v550
    %753 = vmatpush1.msra.mxu0 %v549
    %754 = vmatprep.subr.mxu0 %v554
    %755 = vmatpush1.msra.mxu0 %v553
    %756 = vmatprep.subr.mxu0 %v558
    %757 = vmatpush1.msra.mxu0 %v557
    %758 = vmatprep.subr.mxu0 %v562
    %759 = vmatpush1.msra.mxu0 %v561
    %760 = vmatprep.subr.mxu0 %v566
    %761 = vmatpush1.msra.mxu0 %v565
    %762 = vmatprep.subr.mxu0 %v570
    %763 = vmatpush1.msra.mxu0 %v569
    %764 = vmatprep.subr.mxu0 %v574
    %765 = vmatpush1.msra.mxu0 %v573
    %766 = vmatprep.subr.mxu0 %v578
    %767 = vmatpush1.msra.mxu0 %v577
    %768 = vmatprep.subr.mxu0 %v582
    %769 = vmatpush1.msra.mxu0 %v581
    %770 = vmatprep.subr.mxu0 %v586
    %771 = vmatpush1.msra.mxu0 %v585
    %772 = vmatprep.subr.mxu0 %v590
    %773 = vmatpush1.msra.mxu0 %v589
    %774 = vmatprep.subr.mxu0 %v594
    %775 = vmatpush1.msra.mxu0 %v593
    %776 = vmatprep.subr.mxu0 %v598
    %777 = vmatpush1.msra.mxu0 %v597
    %778 = vmatprep.subr.mxu0 %v602
    %779 = vmatpush1.msra.mxu0 %v601
    %780 = vmatprep.subr.mxu0 %v606
    %781 = vmatpush1.msra.mxu0 %v605
    %782 = vmatprep.subr.mxu0 %v610
    %783 = vmatpush1.msra.mxu0 %v609
    %784 = vmatprep.subr.mxu0 %v614
    %785 = vmatpush1.msra.mxu0 %v613
    %786 = vmatprep.subr.mxu0 %v618
    %787 = vmatpush1.msra.mxu0 %v617
    %788 = vmatprep.subr.mxu0 %v622
    %789 = vmatpush1.msra.mxu0 %v621
    %790 = vmatprep.subr.mxu0 %v626
    %791 = vmatpush1.msra.mxu0 %v625
    %792 = vmatprep.subr.mxu0 %v630
    %793 = vmatpush1.msra.mxu0 %v629
    %794 = vmatprep.subr.mxu0 %v634
    %795 = vmatpush1.msra.mxu0 %v633
    %796 = vmatprep.subr.mxu0 %v638
    %797 = vmatpush1.msra.mxu0 %v637
    %798 = vmatprep.subr.mxu0 %v642
    %799 = vmatpush1.msra.mxu0 %v641
    %800 = vmatprep.subr.mxu0 %v646
    %801 = vmatpush1.msra.mxu0 %v645
    %802 = vmatprep.subr.mxu0 %v650
    %803 = vmatpush1.msra.mxu0 %v649
    %804 = vmatprep.subr.mxu0 %v654
    %805 = vmatpush1.msra.mxu0 %v653
    %806 = vmatprep.subr.mxu0 %v658
    %807 = vmatpush1.msra.mxu0 %v657
    %808 = vmatprep.mubr.f32.mxu0 %v384
    %809 = vmatmul.mubr.f32.gmra.mrb[0].mxu0 %v383
    %v810 = vpop.f32.mrb[0].mxu0
    %v811 = vadd.f32 %v728, %v810
    %v812 = vpop.f32.mrb[0].mxu0
    %v813 = vadd.f32 %v730, %v812
    %814 = vmatprep.mubr.f32.mxu0 %v388
    %815 = vmatmul.mubr.f32.gmra.mrb[0].mxu0 %v387
    %v816 = vpop.f32.mrb[0].mxu0
    %v817 = vadd.f32 %v734, %v816
    %v818 = vpop.f32.mrb[0].mxu0
    %v819 = vadd.f32 %v736, %v818
    %820 = vmatprep.mubr.f32.mxu0 %v392
    %821 = vmatmul.mubr.f32.gmra.mrb[0].mxu0 %v391
    %v822 = vpop.f32.mrb[0].mxu0
    %v823 = vadd.f32 %v740, %v822
    %v824 = vpop.f32.mrb[0].mxu0
    %v825 = vadd.f32 %v742, %v824
    %826 = vdwg.mxu0
    %827 = vmatprep.subr.mxu0 %v408
    %828 = vmatpush1.msra.mxu0 %v407
    %829 = vmatprep.subr.mxu0 %v412
    %830 = vmatpush1.msra.mxu0 %v411
    %831 = vmatprep.subr.mxu0 %v416
    %832 = vmatpush1.msra.mxu0 %v415
    %833 = vmatprep.subr.mxu0 %v420
    %834 = vmatpush1.msra.mxu0 %v419
    %835 = vmatprep.subr.mxu0 %v424
    %836 = vmatpush1.msra.mxu0 %v423
    %837 = vmatprep.subr.mxu0 %v428
    %838 = vmatpush1.msra.mxu0 %v427
    %839 = vmatprep.subr.mxu0 %v432
    %840 = vmatpush1.msra.mxu0 %v431
    %841 = vmatprep.subr.mxu0 %v436
    %842 = vmatpush1.msra.mxu0 %v435
    %843 = vmatprep.subr.mxu0 %v440
    %844 = vmatpush1.msra.mxu0 %v439
    %845 = vmatprep.subr.mxu0 %v444
    %846 = vmatpush1.msra.mxu0 %v443
    %847 = vmatprep.subr.mxu0 %v448
    %848 = vmatpush1.msra.mxu0 %v447
    %849 = vmatprep.subr.mxu0 %v452
    %850 = vmatpush1.msra.mxu0 %v451
    %851 = vmatprep.subr.mxu0 %v456
    %852 = vmatpush1.msra.mxu0 %v455
    %853 = vmatprep.subr.mxu0 %v460
    %854 = vmatpush1.msra.mxu0 %v459
    %855 = vmatprep.subr.mxu0 %v464
    %856 = vmatpush1.msra.mxu0 %v463
    %857 = vmatprep.subr.mxu0 %v468
    %858 = vmatpush1.msra.mxu0 %v467
    %859 = vmatprep.subr.mxu0 %v472
    %860 = vmatpush1.msra.mxu0 %v471
    %861 = vmatprep.subr.mxu0 %v476
    %862 = vmatpush1.msra.mxu0 %v475
    %863 = vmatprep.subr.mxu0 %v480
    %864 = vmatpush1.msra.mxu0 %v479
    %865 = vmatprep.subr.mxu0 %v484
    %866 = vmatpush1.msra.mxu0 %v483
    %867 = vmatprep.subr.mxu0 %v488
    %868 = vmatpush1.msra.mxu0 %v487
    %869 = vmatprep.subr.mxu0 %v492
    %870 = vmatpush1.msra.mxu0 %v491
    %871 = vmatprep.subr.mxu0 %v496
    %872 = vmatpush1.msra.mxu0 %v495
    %873 = vmatprep.subr.mxu0 %v500
    %874 = vmatpush1.msra.mxu0 %v499
    %875 = vmatprep.subr.mxu0 %v504
    %876 = vmatpush1.msra.mxu0 %v503
    %877 = vmatprep.subr.mxu0 %v508
    %878 = vmatpush1.msra.mxu0 %v507
    %879 = vmatprep.subr.mxu0 %v512
    %880 = vmatpush1.msra.mxu0 %v511
    %881 = vmatprep.subr.mxu0 %v516
    %882 = vmatpush1.msra.mxu0 %v515
    %883 = vmatprep.subr.mxu0 %v520
    %884 = vmatpush1.msra.mxu0 %v519
    %885 = vmatprep.subr.mxu0 %v524
    %886 = vmatpush1.msra.mxu0 %v523
    %887 = vmatprep.subr.mxu0 %v528
    %888 = vmatpush1.msra.mxu0 %v527
    %889 = vmatprep.subr.mxu0 %v532
    %890 = vmatpush1.msra.mxu0 %v531
    %891 = vmatprep.mubr.f32.mxu0 %v382
    %892 = vmatmul.mubr.f32.gmra.mrb[0].mxu0 %v381
    %v893 = vpop.f32.mrb[0].mxu0
    %v894 = vadd.f32 0.0, %v893
    %v895 = vpop.f32.mrb[0].mxu0
    %v896 = vadd.f32 0.0, %v895
    %897 = vmatprep.mubr.f32.mxu0 %v386
    %898 = vmatmul.mubr.f32.gmra.mrb[0].mxu0 %v385
    %v899 = vpop.f32.mrb[0].mxu0
    %v900 = vadd.f32 0.0, %v899
    %v901 = vpop.f32.mrb[0].mxu0
    %v902 = vadd.f32 0.0, %v901
    %903 = vmatprep.mubr.f32.mxu0 %v390
    %904 = vmatmul.mubr.f32.gmra.mrb[0].mxu0 %v389
    %v905 = vpop.f32.mrb[0].mxu0
    %v906 = vadd.f32 0.0, %v905
    %v907 = vpop.f32.mrb[0].mxu0
    %v908 = vadd.f32 0.0, %v907
    %909 = vdwg.mxu0
    %910 = vmatprep.subr.mxu0 %v536
    %911 = vmatpush1.msra.mxu0 %v535
    %912 = vmatprep.subr.mxu0 %v540
    %913 = vmatpush1.msra.mxu0 %v539
    %914 = vmatprep.subr.mxu0 %v544
    %915 = vmatpush1.msra.mxu0 %v543
    %916 = vmatprep.subr.mxu0 %v548
    %917 = vmatpush1.msra.mxu0 %v547
    %918 = vmatprep.subr.mxu0 %v552
    %919 = vmatpush1.msra.mxu0 %v551
    %920 = vmatprep.subr.mxu0 %v556
    %921 = vmatpush1.msra.mxu0 %v555
    %922 = vmatprep.subr.mxu0 %v560
    %923 = vmatpush1.msra.mxu0 %v559
    %924 = vmatprep.subr.mxu0 %v564
    %925 = vmatpush1.msra.mxu0 %v563
    %926 = vmatprep.subr.mxu0 %v568
    %927 = vmatpush1.msra.mxu0 %v567
    %928 = vmatprep.subr.mxu0 %v572
    %929 = vmatpush1.msra.mxu0 %v571
    %930 = vmatprep.subr.mxu0 %v576
    %931 = vmatpush1.msra.mxu0 %v575
    %932 = vmatprep.subr.mxu0 %v580
    %933 = vmatpush1.msra.mxu0 %v579
    %934 = vmatprep.subr.mxu0 %v584
    %935 = vmatpush1.msra.mxu0 %v583
    %936 = vmatprep.subr.mxu0 %v588
    %937 = vmatpush1.msra.mxu0 %v587
    %938 = vmatprep.subr.mxu0 %v592
    %939 = vmatpush1.msra.mxu0 %v591
    %940 = vmatprep.subr.mxu0 %v596
    %941 = vmatpush1.msra.mxu0 %v595
    %942 = vmatprep.subr.mxu0 %v600
    %943 = vmatpush1.msra.mxu0 %v599
    %944 = vmatprep.subr.mxu0 %v604
    %945 = vmatpush1.msra.mxu0 %v603
    %946 = vmatprep.subr.mxu0 %v608
    %947 = vmatpush1.msra.mxu0 %v607
    %948 = vmatprep.subr.mxu0 %v612
    %949 = vmatpush1.msra.mxu0 %v611
    %950 = vmatprep.subr.mxu0 %v616
    %951 = vmatpush1.msra.mxu0 %v615
    %952 = vmatprep.subr.mxu0 %v620
    %953 = vmatpush1.msra.mxu0 %v619
    %954 = vmatprep.subr.mxu0 %v624
    %955 = vmatpush1.msra.mxu0 %v623
    %956 = vmatprep.subr.mxu0 %v628
    %957 = vmatpush1.msra.mxu0 %v627
    %958 = vmatprep.subr.mxu0 %v632
    %959 = vmatpush1.msra.mxu0 %v631
    %960 = vmatprep.subr.mxu0 %v636
    %961 = vmatpush1.msra.mxu0 %v635
    %962 = vmatprep.subr.mxu0 %v640
    %963 = vmatpush1.msra.mxu0 %v639
    %964 = vmatprep.subr.mxu0 %v644
    %965 = vmatpush1.msra.mxu0 %v643
    %966 = vmatprep.subr.mxu0 %v648
    %967 = vmatpush1.msra.mxu0 %v647
    %968 = vmatprep.subr.mxu0 %v652
    %969 = vmatpush1.msra.mxu0 %v651
    %970 = vmatprep.subr.mxu0 %v656
    %971 = vmatpush1.msra.mxu0 %v655
    %972 = vmatprep.subr.mxu0 %v660
    %973 = vmatpush1.msra.mxu0 %v659
    %974 = vmatprep.mubr.f32.mxu0 %v384
    %975 = vmatmul.mubr.f32.gmra.mrb[0].mxu0 %v383
    %v976 = vpop.f32.mrb[0].mxu0
    %v977 = vadd.f32 %v894, %v976
    %v978 = vpop.f32.mrb[0].mxu0
    %v979 = vadd.f32 %v896, %v978
    %980 = vmatprep.mubr.f32.mxu0 %v388
    %981 = vmatmul.mubr.f32.gmra.mrb[0].mxu0 %v387
    %v982 = vpop.f32.mrb[0].mxu0
    %v983 = vadd.f32 %v900, %v982
    %v984 = vpop.f32.mrb[0].mxu0
    %v985 = vadd.f32 %v902, %v984
    %986 = vmatprep.mubr.f32.mxu0 %v392
    %987 = vmatmul.mubr.f32.gmra.mrb[0].mxu0 %v391
    %v988 = vpop.f32.mrb[0].mxu0
    %v989 = vadd.f32 %v906, %v988
    %v990 = vpop.f32.mrb[0].mxu0
    %v991 = vadd.f32 %v908, %v990
    %992 = vdwg.mxu0
    %v993 = vld [vmem:[%s5] ss:$4 sm:$0x3]
    %v995 = vlaneseq
    %v996 = vshrl.u32 %v995, 7
    %v997 = vsub.s32 0, %v996
    %v998 = vrot.slane %v993, %v997
    %v999 = vlaneseq
    %v1000 = vshrl.u32 %v999, 7
    %v1001 = vsub.s32 1, %v1000
    %v1002 = vrot.slane %v993, %v1001
    %v1005 = vadd.f32 %v811, %v998
    %v1006 = vadd.f32 %v813, %v1002
    %v1007 = vadd.f32 %v817, %v998
    %v1008 = vadd.f32 %v819, %v1002
    %v1009 = vadd.f32 %v823, %v998
    %v1010 = vadd.f32 %v825, %v1002
    %v1011 = vtanh.pop %v1005
    %v1012 = vtanh.pop %v1006
    %v1013 = vtanh.pop %v1007
    %v1014 = vtanh.pop %v1008
    %v1015 = vtanh.pop %v1009
    %v1016 = vtanh.pop %v1010
    %s1017 = scalar_lea.vmem %s5, 1
    %v1018 = vld [vmem:[%s1017] ss:$4 sm:$0x3]
    %v1020 = vlaneseq
    %v1021 = vshrl.u32 %v1020, 7
    %v1022 = vsub.s32 0, %v1021
    %v1023 = vrot.slane %v1018, %v1022
    %v1024 = vlaneseq
    %v1025 = vshrl.u32 %v1024, 7
    %v1026 = vsub.s32 1, %v1025
    %v1027 = vrot.slane %v1018, %v1026
    %v1030 = vadd.f32 %v977, %v1023
    %v1031 = vadd.f32 %v979, %v1027
    %v1032 = vadd.f32 %v983, %v1023
    %v1033 = vadd.f32 %v985, %v1027
    %v1034 = vadd.f32 %v989, %v1023
    %v1035 = vadd.f32 %v991, %v1027
    %v1036 = vxor.u32 %v1030, 2147483648
    %v1037 = vxor.u32 %v1031, 2147483648
    %v1038 = vxor.u32 %v1032, 2147483648
    %v1039 = vxor.u32 %v1033, 2147483648
    %v1040 = vxor.u32 %v1034, 2147483648
    %v1041 = vxor.u32 %v1035, 2147483648
    %v1042 = vmul.f32 %v1036, 1.442695
    %v1043 = vpow.pop %v1042
    %v1044 = vmul.f32 %v1037, 1.442695
    %v1045 = vpow.pop %v1044
    %v1046 = vmul.f32 %v1038, 1.442695
    %v1047 = vpow.pop %v1046
    %v1048 = vmul.f32 %v1039, 1.442695
    %v1049 = vpow.pop %v1048
    %v1050 = vmul.f32 %v1040, 1.442695
    %v1051 = vpow.pop %v1050
    %v1052 = vmul.f32 %v1041, 1.442695
    %v1053 = vpow.pop %v1052
    %v1054 = vadd.f32 %v1043, 1.0
    %v1055 = vadd.f32 %v1045, 1.0
    %v1056 = vadd.f32 %v1047, 1.0
    %v1057 = vadd.f32 %v1049, 1.0
    %v1058 = vadd.f32 %v1051, 1.0
    %v1059 = vadd.f32 %v1053, 1.0
    %v1060 = vrcp.pop %v1054
    %v1061 = vmul.f32 1.0, %v1060
    %v1062 = vrcp.pop %v1055
    %v1063 = vmul.f32 1.0, %v1062
    %v1064 = vrcp.pop %v1056
    %v1065 = vmul.f32 1.0, %v1064
    %v1066 = vrcp.pop %v1057
    %v1067 = vmul.f32 1.0, %v1066
    %v1068 = vrcp.pop %v1058
    %v1069 = vmul.f32 1.0, %v1068
    %v1070 = vrcp.pop %v1059
    %v1071 = vmul.f32 1.0, %v1070
    %v1072 = vmul.f32 %v1011, %v1061
    %v1073 = vmul.f32 %v1012, %v1063
    %v1074 = vmul.f32 %v1013, %v1065
    %v1075 = vmul.f32 %v1014, %v1067
    %v1076 = vmul.f32 %v1015, %v1069
    %v1077 = vmul.f32 %v1016, %v1071
    %v1078 = vld [vmem:[%s5 + $0x2] sm:$0x1]
    %v1079 = vld [vmem:[%s5 + $0x3] sm:$0x1]
    %v1080 = vld [vmem:[#allocation8] ss:$2 sm:$0x3]
    %v1081 = vld [vmem:[%s4] ss:$2 sm:$0xf]
    %v1083 = vlaneseq
    %v1084 = vshrl.u32 %v1083, 7
    %v1085 = vsub.s32 0, %v1084
    %v1086 = vrot.slane %v1080, %v1085
    %v1087 = vlaneseq
    %v1088 = vshrl.u32 %v1087, 7
    %v1089 = vsub.s32 1, %v1088
    %v1090 = vrot.slane %v1080, %v1089
    %v1093 = vmul.f32 %v1072, %v1086
    %v1094 = vmul.f32 %v1073, %v1090
    %v1095 = vmul.f32 %v1074, %v1086
    %v1096 = vmul.f32 %v1075, %v1090
    %v1097 = vmul.f32 %v1076, %v1086
    %v1098 = vmul.f32 %v1077, %v1090
    %v1099 = vadd.f32 %v1093, %v1094
    %1100 = vadd.xlane.f32.xlu0 %v1099
    %v1101 = vpop.xlane.xlu0 %1100
    %v1102 = vadd.f32 %v1095, %v1096
    %1103 = vadd.xlane.f32.xlu0 %v1102
    %v1104 = vpop.xlane.xlu0 %1103
    %v1105 = vadd.f32 %v1097, %v1098
    %1106 = vadd.xlane.f32.xlu0 %v1105
    %v1107 = vpop.xlane.xlu0 %1106
    %v1109 = vlaneseq
    %v1110 = vshrl.u32 %v1109, 7
    %v1111 = vsub.s32 0, %v1110
    %v1112 = vrot.slane %v1081, %v1111
    %v1113 = vlaneseq
    %v1114 = vshrl.u32 %v1113, 7
    %v1115 = vsub.s32 1, %v1114
    %v1116 = vrot.slane %v1081, %v1115
    %v1117 = vlaneseq
    %v1118 = vshrl.u32 %v1117, 7
    %v1119 = vsub.s32 2, %v1118
    %v1120 = vrot.slane %v1081, %v1119
    %v1121 = vlaneseq
    %v1122 = vshrl.u32 %v1121, 7
    %v1123 = vsub.s32 3, %v1122
    %v1124 = vrot.slane %v1081, %v1123
    %v1129 = vmul.f32 %v381, %v1112
    %v1130 = vmul.f32 %v382, %v1116
    %v1131 = vmul.f32 %v383, %v1120
    %v1132 = vmul.f32 %v384, %v1124
    %v1133 = vmul.f32 %v385, %v1112
    %v1134 = vmul.f32 %v386, %v1116
    %v1135 = vmul.f32 %v387, %v1120
    %v1136 = vmul.f32 %v388, %v1124
    %v1137 = vmul.f32 %v389, %v1112
    %v1138 = vmul.f32 %v390, %v1116
    %v1139 = vmul.f32 %v391, %v1120
    %v1140 = vmul.f32 %v392, %v1124
    %v1141 = vadd.f32 %v1129, %v1130
    %v1142 = vadd.f32 %v1141, %v1131
    %v1143 = vadd.f32 %v1142, %v1132
    %1144 = vadd.xlane.f32.xlu0 %v1143
    %v1145 = vpop.xlane.xlu0 %1144
    %v1146 = vadd.f32 %v1133, %v1134
    %v1147 = vadd.f32 %v1146, %v1135
    %v1148 = vadd.f32 %v1147, %v1136
    %1149 = vadd.xlane.f32.xlu0 %v1148
    %v1150 = vpop.xlane.xlu0 %1149
    %v1151 = vadd.f32 %v1137, %v1138
    %v1152 = vadd.f32 %v1151, %v1139
    %v1153 = vadd.f32 %v1152, %v1140
    %1154 = vadd.xlane.f32.xlu0 %v1153
    %v1155 = vpop.xlane.xlu0 %1154
    %s1156 = scalar_lea.vmem [#allocation8], 1
    %v1157 = vld [vmem:[%s1156] ss:$2 sm:$0x3]
    %s1158 = scalar_lea.vmem %s4, 1
    %v1159 = vld [vmem:[%s1158] ss:$2 sm:$0xf]
    %v1161 = vlaneseq
    %v1162 = vshrl.u32 %v1161, 7
    %v1163 = vsub.s32 0, %v1162
    %v1164 = vrot.slane %v1157, %v1163
    %v1165 = vlaneseq
    %v1166 = vshrl.u32 %v1165, 7
    %v1167 = vsub.s32 1, %v1166
    %v1168 = vrot.slane %v1157, %v1167
    %v1171 = vmul.f32 %v1072, %v1164
    %v1172 = vmul.f32 %v1073, %v1168
    %v1173 = vmul.f32 %v1074, %v1164
    %v1174 = vmul.f32 %v1075, %v1168
    %v1175 = vmul.f32 %v1076, %v1164
    %v1176 = vmul.f32 %v1077, %v1168
    %v1177 = vadd.f32 %v1171, %v1172
    %1178 = vadd.xlane.f32.xlu0 %v1177
    %v1179 = vpop.xlane.xlu0 %1178
    %v1180 = vadd.f32 %v1173, %v1174
    %1181 = vadd.xlane.f32.xlu0 %v1180
    %v1182 = vpop.xlane.xlu0 %1181
    %v1183 = vadd.f32 %v1175, %v1176
    %1184 = vadd.xlane.f32.xlu0 %v1183
    %v1185 = vpop.xlane.xlu0 %1184
    %v1187 = vlaneseq
    %v1188 = vshrl.u32 %v1187, 7
    %v1189 = vsub.s32 0, %v1188
    %v1190 = vrot.slane %v1159, %v1189
    %v1191 = vlaneseq
    %v1192 = vshrl.u32 %v1191, 7
    %v1193 = vsub.s32 1, %v1192
    %v1194 = vrot.slane %v1159, %v1193
    %v1195 = vlaneseq
    %v1196 = vshrl.u32 %v1195, 7
    %v1197 = vsub.s32 2, %v1196
    %v1198 = vrot.slane %v1159, %v1197
    %v1199 = vlaneseq
    %v1200 = vshrl.u32 %v1199, 7
    %v1201 = vsub.s32 3, %v1200
    %v1202 = vrot.slane %v1159, %v1201
    %v1207 = vmul.f32 %v381, %v1190
    %v1208 = vmul.f32 %v382, %v1194
    %v1209 = vmul.f32 %v383, %v1198
    %v1210 = vmul.f32 %v384, %v1202
    %v1211 = vmul.f32 %v385, %v1190
    %v1212 = vmul.f32 %v386, %v1194
    %v1213 = vmul.f32 %v387, %v1198
    %v1214 = vmul.f32 %v388, %v1202
    %v1215 = vmul.f32 %v389, %v1190
    %v1216 = vmul.f32 %v390, %v1194
    %v1217 = vmul.f32 %v391, %v1198
    %v1218 = vmul.f32 %v392, %v1202
    %v1219 = vadd.f32 %v1207, %v1208
    %v1220 = vadd.f32 %v1219, %v1209
    %v1221 = vadd.f32 %v1220, %v1210
    %1222 = vadd.xlane.f32.xlu0 %v1221
    %v1223 = vpop.xlane.xlu0 %1222
    %v1224 = vadd.f32 %v1211, %v1212
    %v1225 = vadd.f32 %v1224, %v1213
    %v1226 = vadd.f32 %v1225, %v1214
    %1227 = vadd.xlane.f32.xlu0 %v1226
    %v1228 = vpop.xlane.xlu0 %1227
    %v1229 = vadd.f32 %v1215, %v1216
    %v1230 = vadd.f32 %v1229, %v1217
    %v1231 = vadd.f32 %v1230, %v1218
    %1232 = vadd.xlane.f32.xlu0 %v1231
    %v1233 = vpop.xlane.xlu0 %1232
    %vm1234 = vcmask 7168
    %v1235 = vsel %vm1234, %v1101, %v1179
    %v1236 = vsel %vm1234, %v1104, %v1182
    %v1237 = vsel %vm1234, %v1107, %v1185
    %v1238 = vlaneseq
    %v1239 = vshrl.u32 %v1238, 7
    %v1240 = vsub.s32 0, %v1239
    %v1241 = vrot.slane %v1078, %v1240
    %v1242 = vadd.f32 %v1235, %v1241
    %v1243 = vadd.f32 %v1236, %v1241
    %v1244 = vadd.f32 %v1237, %v1241
    %v1245 = vsel %vm1234, %v1145, %v1223
    %v1246 = vsel %vm1234, %v1150, %v1228
    %v1247 = vsel %vm1234, %v1155, %v1233
    %vm1248 = vcmask 15360
    %1249 = vst.msk [vmem:[%s7] sm:$0xff] %vm1248, %v1242
    %1250 = vst.msk [vmem:[%s7 + $0x8] sm:$0xff] %vm1248, %v1243
    %1251 = vst.msk [vmem:[%s7 + $0x10] sm:$0xff] %vm1248, %v1244
    %v1252 = vlaneseq
    %v1253 = vshrl.u32 %v1252, 7
    %v1254 = vlaneseq
    %v1255 = vand.u32 %v1254, 127
    %vm1256 = vcmp.eq.s32.totalorder %v1253, %v1255
    %v1257 = vsel %vm1248, %v1242, -inf
    %v1258 = vrot.slane %v1257, 4
    %v1259 = vmax.f32 %v1257, %v1258
    %v1260 = vrot.slane %v1259, 2
    %v1261 = vmax.f32 %v1259, %v1260
    %v1262 = vrot.slane %v1261, 1
    %v1263 = vmax.f32 %v1261, %v1262
    %v1264 = vsub.f32 %v1242, %v1263
    %v1265 = vmul.f32 %v1264, 1.442695
    %v1266 = vpow.pop %v1265
    %v1267 = vsel %vm1248, %v1266, 0.0
    %v1268 = vrot.slane %v1267, 4
    %v1269 = vadd.f32 %v1267, %v1268
    %v1270 = vrot.slane %v1269, 2
    %v1271 = vadd.f32 %v1269, %v1270
    %v1272 = vrot.slane %v1271, 1
    %v1273 = vadd.f32 %v1271, %v1272
    %v1274 = vrcp.pop %v1273
    %v1275 = vmul.f32 %v1266, %v1274
    %v1276 = vmul.f32 %v1275, %v1245
    %1278 = vset.pattern.permute.xlu0 1
    %1279 = vperm.xlu0 %1278, %v1275
    %v1280 = vpop.permute.xlu0 %1279
    %v1282 = vmul.f32 %v1280, %v1245
    %v1283 = vsel %vm1256, %v1282, 0.0
    %v1284 = vsel %vm1248, %v1283, 0.0
    %v1285 = vrot.slane %v1284, 4
    %v1286 = vadd.f32 %v1284, %v1285
    %v1287 = vrot.slane %v1286, 2
    %v1288 = vadd.f32 %v1286, %v1287
    %v1289 = vrot.slane %v1288, 1
    %v1290 = vadd.f32 %v1288, %v1289
    %v1291 = vadd.f32 %v1290, %v1079
    %v1292 = vsel %vm1248, %v1243, -inf
    %v1293 = vrot.slane %v1292, 4
    %v1294 = vmax.f32 %v1292, %v1293
    %v1295 = vrot.slane %v1294, 2
    %v1296 = vmax.f32 %v1294, %v1295
    %v1297 = vrot.slane %v1296, 1
    %v1298 = vmax.f32 %v1296, %v1297
    %v1299 = vsub.f32 %v1243, %v1298
    %v1300 = vmul.f32 %v1299, 1.442695
    %v1301 = vpow.pop %v1300
    %v1302 = vsel %vm1248, %v1301, 0.0
    %v1303 = vrot.slane %v1302, 4
    %v1304 = vadd.f32 %v1302, %v1303
    %v1305 = vrot.slane %v1304, 2
    %v1306 = vadd.f32 %v1304, %v1305
    %v1307 = vrot.slane %v1306, 1
    %v1308 = vadd.f32 %v1306, %v1307
    %v1309 = vrcp.pop %v1308
    %v1310 = vmul.f32 %v1301, %v1309
    %v1311 = vmul.f32 %v1310, %v1246
    %1313 = vset.pattern.permute.xlu0 1
    %1314 = vperm.xlu0 %1313, %v1310
    %v1315 = vpop.permute.xlu0 %1314
    %v1317 = vmul.f32 %v1315, %v1246
    %v1318 = vsel %vm1256, %v1317, 0.0
    %v1319 = vsel %vm1248, %v1318, 0.0
    %v1320 = vrot.slane %v1319, 4
    %v1321 = vadd.f32 %v1319, %v1320
    %v1322 = vrot.slane %v1321, 2
    %v1323 = vadd.f32 %v1321, %v1322
    %v1324 = vrot.slane %v1323, 1
    %v1325 = vadd.f32 %v1323, %v1324
    %v1326 = vadd.f32 %v1325, %v1079
    %v1327 = vsel %vm1248, %v1244, -inf
    %v1328 = vrot.slane %v1327, 4
    %v1329 = vmax.f32 %v1327, %v1328
    %v1330 = vrot.slane %v1329, 2
    %v1331 = vmax.f32 %v1329, %v1330
    %v1332 = vrot.slane %v1331, 1
    %v1333 = vmax.f32 %v1331, %v1332
    %v1334 = vsub.f32 %v1244, %v1333
    %v1335 = vmul.f32 %v1334, 1.442695
    %v1336 = vpow.pop %v1335
    %v1337 = vsel %vm1248, %v1336, 0.0
    %v1338 = vrot.slane %v1337, 4
    %v1339 = vadd.f32 %v1337, %v1338
    %v1340 = vrot.slane %v1339, 2
    %v1341 = vadd.f32 %v1339, %v1340
    %v1342 = vrot.slane %v1341, 1
    %v1343 = vadd.f32 %v1341, %v1342
    %v1344 = vrcp.pop %v1343
    %v1345 = vmul.f32 %v1336, %v1344
    %v1346 = vmul.f32 %v1345, %v1247
    %1348 = vset.pattern.permute.xlu0 1
    %1349 = vperm.xlu0 %1348, %v1345
    %v1350 = vpop.permute.xlu0 %1349
    %v1352 = vmul.f32 %v1350, %v1247
    %v1353 = vsel %vm1256, %v1352, 0.0
    %v1354 = vsel %vm1248, %v1353, 0.0
    %v1355 = vrot.slane %v1354, 4
    %v1356 = vadd.f32 %v1354, %v1355
    %v1357 = vrot.slane %v1356, 2
    %v1358 = vadd.f32 %v1356, %v1357
    %v1359 = vrot.slane %v1358, 1
    %v1360 = vadd.f32 %v1358, %v1359
    %v1361 = vadd.f32 %v1360, %v1079
    %1362 = vst.msk [vmem:[%s9] sm:$0xff] %vm1248, %v1276
    %1363 = vst.msk [vmem:[%s9 + $0x8] sm:$0xff] %vm1248, %v1311
    %1364 = vst.msk [vmem:[%s9 + $0x10] sm:$0xff] %vm1248, %v1346
    %v1366 = vrot.slane %v1326, 7
    %v1369 = vrot.slane %v1361, 6
    %vm1371 = vcmask 1040384
    %v1372 = vsel %vm1371, %v1291, %v1366
    %vm1373 = vcmask 1041408
    %v1374 = vsel %vm1373, %v1372, %v1369
    %vm1375 = vcmask 10240
    %1376 = vst.msk [vmem:[%s8] sm:$0x7] %vm1375, %v1374
    // Predicated region
    $region42: #{tpu_custom_call.1} parent=1 // pred_check
      _
    $region43: #{tpu_custom_call.1} parent=1 // pred_check_branch
      %1378 = sbr.rel (0) target = $region45
    $region44: #{tpu_custom_call.1} parent=1 // pred_region
      %s1380 = ssub.s32 1536, 1536
      %1381 = vsyncadd [#allocation4], %s1380
      %s1382 = sshll.u32 [#allocation10], 4
      %s1383 = int_to_ptr.vmem [resolvable:$true] %s1382
      %1388 = dma.vmem_to_hbm [thread:$0]  %s1383, 1536, %s6, [#allocation4], 512, 512, 32
    $region45: #{tpu_custom_call.1} parent=1 // pred_fallthru
      _
    // Predicated region
    $region46: #{tpu_custom_call.1} parent=1 // pred_check
      _
    $region47: #{tpu_custom_call.1} parent=1 // pred_check_branch
      %1390 = sbr.rel (0) target = $region49
    $region48: #{tpu_custom_call.1} parent=1 // pred_region
      _
    $region49: #{tpu_custom_call.1} parent=1 // pred_fallthru
      _
    // Predicated region
    $region50: #{tpu_custom_call.1} parent=1 // pred_check
      _
    $region51: #{tpu_custom_call.1} parent=1 // pred_check_branch
      %1392 = sbr.rel (0) target = $region53
    $region52: #{tpu_custom_call.1} parent=1 // pred_region
      _
    $region53: #{tpu_custom_call.1} parent=1 // pred_fallthru
      _
    // Predicated region
    $region54: #{tpu_custom_call.1} parent=1 // pred_check
      _
    $region55: #{tpu_custom_call.1} parent=1 // pred_check_branch
      %1394 = sbr.rel (0) target = $region57
    $region56: #{tpu_custom_call.1} parent=1 // pred_region
      _
    $region57: #{tpu_custom_call.1} parent=1 // pred_fallthru
      _
    // Predicated region
    $region58: #{tpu_custom_call.1} parent=1 // pred_check
      _
    $region59: #{tpu_custom_call.1} parent=1 // pred_check_branch
      %1396 = sbr.rel (0) target = $region61
    $region60: #{tpu_custom_call.1} parent=1 // pred_region
      %1397 = dma.done [#allocation4], 1536
    $region61: #{tpu_custom_call.1} parent=1 // pred_fallthru
      _
    // Predicated region
    $region62: #{tpu_custom_call.1} parent=1 // pred_check
      _
    $region63: #{tpu_custom_call.1} parent=1 // pred_check_branch
      %1399 = sbr.rel (0) target = $region65
    $region64: #{tpu_custom_call.1} parent=1 // pred_region
      _
    $region65: #{tpu_custom_call.1} parent=1 // pred_fallthru
      _
    // Predicated region
    $region66: #{tpu_custom_call.1} parent=1 // pred_check
      _
    $region67: #{tpu_custom_call.1} parent=1 // pred_check_branch
      %1401 = sbr.rel (0) target = $region69
    $region68: #{tpu_custom_call.1} parent=1 // pred_region
      _
    $region69: #{tpu_custom_call.1} parent=1 // pred_fallthru
      _
    // Predicated region
    $region70: #{tpu_custom_call.1} parent=1 // pred_check
      _
    $region71: #{tpu_custom_call.1} parent=1 // pred_check_branch
      %1403 = sbr.rel (0) target = $region73
    $region72: #{tpu_custom_call.1} parent=1 // pred_region
      _
    $region73: #{tpu_custom_call.1} parent=1 // pred_fallthru
      _
    %1404 = vsyncpa [#allocation3], 1
    %1405 = vsyncpa [#allocation6], 1
    %1406 = vsyncpa [#allocation9], 1
    %1407 = vsyncpa [#allocation4], 1

</llo_original>
